<compile_context>
chip_gen: v7x
topology: tpu7x:2x2x1
jax: 0.10.0
libtpu: 0.0.40
codegen_flags: <defaults>
</compile_context>

<pallas_src>
import functools

import jax
import jax.numpy as jnp
from jax.experimental import pallas as pl
from jax.experimental.pallas import tpu as pltpu


def _round_up(x, m):
    return (x + m - 1) // m * m


def _cdiv(a, b):
    return (a + b - 1) // b


# ---------------------------------------------------------------------------
# Kernel
# ---------------------------------------------------------------------------
def _make_fused_sep_head_kernel(head_layout):
    """Build the fused kernel; head_layout = ((name, offset, classes), ...) is static."""

    def kernel(x_ref, w1t_ref, b1_ref, w2t_ref, b2_ref, *o_refs):
        # x_ref:   (1, Cin,  TP) bf16  pixel tile (channels on sublanes, pixels on lanes)
        # w1t_ref: (Htot, Cin)   bf16  concatenated first-layer weights (transposed)
        # b1_ref:  (Htot, 1)     f32
        # w2t_ref: (Cout, Htot)  bf16  block-diagonal second-layer weights (transposed)
        # b2_ref:  (Cout, 1)     f32
        # o_refs:  per head (1, classes_i, TP) f32 lane-dense output tiles
        x = x_ref[0]                                                  # (Cin, TP)
        # Layer 1 on the MXU, f32 accumulate.
        h = jnp.dot(w1t_ref[...], x, preferred_element_type=jnp.float32)
        h = jnp.maximum(h + b1_ref[...], 0.0)                         # bias + ReLU (f32)
        # bf16 intermediate: halves the (Htot, TP) VMEM round-trip (vst slot
        # is the saturating unit at f32 width).
        h = h.astype(jnp.bfloat16)
        # Layer 2 (block-diagonal packed), f32 accumulate.
        y = jnp.dot(w2t_ref[...], h, preferred_element_type=jnp.float32)
        y = y + b2_ref[...]
        # Per-head lane-dense stores; channel offsets are static Python ints.
        for o_ref, (_, off, cls) in zip(o_refs, head_layout):
            o_ref[0] = y[off:off + cls].astype(o_ref.dtype)

    return kernel


# ---------------------------------------------------------------------------
# Wrapper
# ---------------------------------------------------------------------------
@functools.partial(jax.jit, static_argnames=("head_layout", "tile_p"))
def sep_head_forward(x_nchw, w1t, b1, w2t, b2, *, head_layout, tile_p=4096):
    """x_nchw: (N, Cin, H, W) -> dict head -> (N, classes, H, W) float32."""
    N, C, H, W = x_nchw.shape
    HW = H * W
    Htot = w1t.shape[0]
    Cout = w2t.shape[0]

    # ---- pixel tiling -----------------------------------------------------
    # Big lane-dense tiles (multiple of 128) amortize per-step overhead; the
    # ragged last block (HW not a multiple of tp) is handled by Pallas, so no
    # jnp.pad / output-slice passes over HBM are needed.
    tp = min(tile_p, _round_up(HW, 128))
    if N == 1:
        # v7x megacore: make sure both TensorCores get at least one block.
        tp = min(tp, max(128, _round_up(_cdiv(HW, 2), 128)))
    grid = (N, _cdiv(HW, tp))

    x = x_nchw.reshape(N, C, HW)

    # ---- sublane density: pad Cin to a multiple of 8 (no-op for Cin>=8k) ---
    C_pad = _round_up(C, 8)
    if C_pad != C:
        x = jnp.pad(x, ((0, 0), (0, C_pad - C), (0, 0)))
        w1t = jnp.pad(w1t, ((0, 0), (0, C_pad - C)))

    # ---- bf16 operands, f32 accumulate inside the kernel --------------------
    # (In a real model the x cast fuses into the producing layer; weights are
    # cast once outside the hot path.)
    x = x.astype(jnp.bfloat16)
    w1t = w1t.astype(jnp.bfloat16)
    w2t = w2t.astype(jnp.bfloat16)
    b1 = b1.astype(jnp.float32)
    b2 = b2.astype(jnp.float32)

    out_shapes = tuple(
        jax.ShapeDtypeStruct((N, cls, HW), jnp.float32)
        for _, _, cls in head_layout)
    out_specs = tuple(
        pl.BlockSpec((1, cls, tp), lambda n, p: (n, 0, p))
        for _, _, cls in head_layout)

    flops = 2 * N * HW * (C_pad * Htot + Htot * Cout)
    bytes_accessed = (
        2 * N * C_pad * HW                              # bf16 x read
        + 2 * (int(w1t.size) + int(w2t.size))           # bf16 weights
        + 4 * (int(b1.size) + int(b2.size))             # f32 biases
        + 4 * N * Cout * HW                             # f32 per-head outputs
    )

    outs = pl.pallas_call(
        _make_fused_sep_head_kernel(head_layout),
        out_shape=out_shapes,
        grid_spec=pl.GridSpec(
            grid=grid,
            in_specs=[
                pl.BlockSpec((1, C_pad, tp), lambda n, p: (n, 0, p)),
                pl.BlockSpec(w1t.shape, lambda n, p: (0, 0)),
                pl.BlockSpec(b1.shape, lambda n, p: (0, 0)),
                pl.BlockSpec(w2t.shape, lambda n, p: (0, 0)),
                pl.BlockSpec(b2.shape, lambda n, p: (0, 0)),
            ],
            out_specs=out_specs,
        ),
        compiler_params=pltpu.CompilerParams(
            dimension_semantics=("parallel", "parallel")
        ),
        cost_estimate=pl.CostEstimate(
            flops=flops, transcendentals=0, bytes_accessed=bytes_accessed
        ),
    )(x, w1t, b1, w2t, b2)

    # Splitting the last dim is a metadata-only reshape (no HBM pass).
    return {
        head: o.reshape(N, cls, H, W)
        for o, (head, _, cls) in zip(outs, head_layout)
    }


# ---------------------------------------------------------------------------
# Parameter construction (mirrors SepHead.__init__ shapes/inits)
# ---------------------------------------------------------------------------
def _kaiming_uniform(key, shape, fan_in):
    # kaiming_init (a=0, fan_in, relu): bound = sqrt(6 / fan_in)
    bound = jnp.sqrt(6.0 / fan_in)
    return jax.random.uniform(key, shape, jnp.float32, -bound, bound)


def init_sep_head_params(key, in_channels, heads, head_conv=64, init_bias=-2.19):
    """Per-head params. Conv2d 1x1 weight (out,in,1,1) stored transposed (in,out)."""
    params = {}
    for head, (classes, num_conv) in heads.items():
        assert num_conv == 2, "demo implements the standard num_conv=2 heads"
        key, k1, k2, k3, _ = jax.random.split(key, 5)
        if "hm" in head:
            w1 = _kaiming_uniform(k1, (in_channels, head_conv), in_channels)
            b1 = jax.random.uniform(
                k2, (1, head_conv), jnp.float32,
                -1.0 / jnp.sqrt(in_channels), 1.0 / jnp.sqrt(in_channels))
            w2 = _kaiming_uniform(k3, (head_conv, classes), head_conv)
            b2 = jnp.full((1, classes), init_bias, jnp.float32)
        else:
            w1 = _kaiming_uniform(k1, (in_channels, head_conv), in_channels)
            b1 = jnp.zeros((1, head_conv), jnp.float32)
            w2 = _kaiming_uniform(k3, (head_conv, classes), head_conv)
            b2 = jnp.zeros((1, classes), jnp.float32)
        params[head] = (w1, b1, w2, b2)
    return params


def pack_fused_params(params, heads_static, head_conv):
    """Concatenate first layers, block-diagonalize second layers.

    Returns ((w1t, b1, w2t, b2), head_layout) with
      w1t: (Htot, Cin), b1: (Htot, 1), w2t: (Cout, Htot), b2: (Cout, 1)
      head_layout: tuple of (head, class_offset, classes).
    """
    w1_list, b1_list, w2_list, b2_list, layout = [], [], [], [], []
    off = 0
    for head, (classes, _) in heads_static:
        w1, b1, w2, b2 = params[head]
        w1_list.append(w1)                  # (Cin, Hc)
        b1_list.append(b1.reshape(-1))      # (Hc,)
        w2_list.append(w2)                  # (Hc, classes)
        b2_list.append(b2.reshape(-1))      # (classes,)
        layout.append((head, off, classes))
        off += classes
    cout = off
    n_heads = len(layout)
    htot = n_heads * head_conv

    w1_cat = jnp.concatenate(w1_list, axis=1)        # (Cin, Htot)
    w1t = jnp.transpose(w1_cat)                      # (Htot, Cin)
    b1 = jnp.concatenate(b1_list).reshape(htot, 1)   # (Htot, 1)

    w2_bd = jnp.zeros((htot, cout), jnp.float32)
    b2_vec = jnp.zeros((cout,), jnp.float32)
    for i, (_, off_i, classes) in enumerate(layout):
        w2_bd = w2_bd.at[i * head_conv:(i + 1) * head_conv,
                         off_i:off_i + classes].set(w2_list[i])
        b2_vec = b2_vec.at[off_i:off_i + classes].set(b2_list[i])
    w2t = jnp.transpose(w2_bd)                       # (Cout, Htot)
    b2 = b2_vec.reshape(cout, 1)                     # (Cout, 1)

    return (w1t, b1, w2t, b2), tuple(layout)


# ---------------------------------------------------------------------------
# Demo / correctness check
# ---------------------------------------------------------------------------
if __name__ == "__main__":
    heads = {"reg": (2, 2), "height": (1, 2), "dim": (3, 2),
             "rot": (2, 2), "hm": (3, 2)}
    in_channels = 4
    head_conv = 64
    N, H, W = 2, 16, 16

    key = jax.random.PRNGKey(0)
    key, kx = jax.random.split(key)
    x = jax.random.normal(kx, (N, in_channels, H, W), jnp.float32)

    heads_static = tuple(sorted(heads.items()))
    params = init_sep_head_params(key, in_channels, heads, head_conv=head_conv)
    (w1t, b1f, w2t, b2f), head_layout = pack_fused_params(
        params, heads_static, head_conv)

    out = sep_head_forward(x, w1t, b1f, w2t, b2f, head_layout=head_layout)
    jax.block_until_ready(out)

    # Pure-JAX f32 reference per head (original per-head math). Tolerances
    # loosened for bf16 operands / bf16 intermediate (f32 accumulate).
    x_flat = jnp.transpose(x, (0, 2, 3, 1)).reshape(N * H * W, in_channels)
    for head, (classes, _) in heads.items():
        w1, b1, w2, b2 = params[head]
        ref = jnp.maximum(x_flat @ w1 + b1, 0.0) @ w2 + b2
        ref = jnp.transpose(ref.reshape(N, H, W, classes), (0, 3, 1, 2))
        assert out[head].shape == (N, classes, H, W), (head, out[head].shape)
        assert jnp.allclose(out[head], ref, atol=5e-2, rtol=5e-2), head

    print("KERNEL_OK")
</pallas_src>

<mosaic_0001>
module attributes {stable_mosaic.version = 11 : i64} {
  func.func @kernel(%arg0: i32, %arg1: i32, %arg2: memref<1x8x256xbf16, #tpu.memory_space<vmem>>, %arg3: memref<320x8xbf16, #tpu.memory_space<vmem>>, %arg4: memref<320x1xf32, #tpu.memory_space<vmem>>, %arg5: memref<11x320xbf16, #tpu.memory_space<vmem>>, %arg6: memref<11x1xf32, #tpu.memory_space<vmem>>, %arg7: memref<1x3x256xf32, #tpu.memory_space<vmem>>, %arg8: memref<1x1x256xf32, #tpu.memory_space<vmem>>, %arg9: memref<1x3x256xf32, #tpu.memory_space<vmem>>, %arg10: memref<1x2x256xf32, #tpu.memory_space<vmem>>, %arg11: memref<1x2x256xf32, #tpu.memory_space<vmem>>) attributes {dimension_semantics = [#tpu.dimension_semantics<parallel>, #tpu.dimension_semantics<parallel>], iteration_bounds = array<i64: 2, 1>, scalar_prefetch = 0 : i64, scratch_operands = 0 : i64, tpu.core_type = #tpu.core_type<tc>, window_params = [{transform_indices = @transform_0, window_bounds = array<i64: 1, 8, 256>}, {pipeline_mode = #tpu.pipeline_mode<synchronous>, transform_indices = @transform_1, window_bounds = array<i64: 320, 8>}, {pipeline_mode = #tpu.pipeline_mode<synchronous>, transform_indices = @transform_2, window_bounds = array<i64: 320, 1>}, {pipeline_mode = #tpu.pipeline_mode<synchronous>, transform_indices = @transform_3, window_bounds = array<i64: 11, 320>}, {pipeline_mode = #tpu.pipeline_mode<synchronous>, transform_indices = @transform_4, window_bounds = array<i64: 11, 1>}, {transform_indices = @transform_5, window_bounds = array<i64: 1, 3, 256>}, {transform_indices = @transform_6, window_bounds = array<i64: 1, 1, 256>}, {transform_indices = @transform_7, window_bounds = array<i64: 1, 3, 256>}, {transform_indices = @transform_8, window_bounds = array<i64: 1, 2, 256>}, {transform_indices = @transform_9, window_bounds = array<i64: 1, 2, 256>}]} {
    %c0 = arith.constant 0 : index
    %c0_0 = arith.constant 0 : index
    %c0_1 = arith.constant 0 : index
    %0 = vector.load %arg2[%c0, %c0_0, %c0_1] : memref<1x8x256xbf16, #tpu.memory_space<vmem>>, vector<1x8x256xbf16>
    %1 = vector.shape_cast %0 : vector<1x8x256xbf16> to vector<8x256xbf16>
    %c0_2 = arith.constant 0 : index
    %c0_3 = arith.constant 0 : index
    %2 = vector.load %arg3[%c0_2, %c0_3] : memref<320x8xbf16, #tpu.memory_space<vmem>>, vector<320x8xbf16>
    %cst = arith.constant dense<0.000000e+00> : vector<320x256xf32>
    %3 = tpu.matmul %2, %1, %cst {dimension_numbers = #tpu.dot_dimension_numbers<[1], [0], [0], [1], [0, 0, 1, 1], [], []>} : vector<320x8xbf16>, vector<8x256xbf16>, vector<320x256xf32> -> vector<320x256xf32>
    %c0_4 = arith.constant 0 : index
    %c0_5 = arith.constant 0 : index
    %4 = vector.load %arg4[%c0_4, %c0_5] : memref<320x1xf32, #tpu.memory_space<vmem>>, vector<320x1xf32>
    %5 = vector.broadcast %4 : vector<320x1xf32> to vector<320x256xf32>
    %6 = arith.addf %3, %5 : vector<320x256xf32>
    %cst_6 = arith.constant 0.000000e+00 : f32
    %7 = vector.broadcast %cst_6 : f32 to vector<320x256xf32>
    %8 = arith.maximumf %6, %7 : vector<320x256xf32>
    %9 = arith.truncf %8 : vector<320x256xf32> to vector<320x256xbf16>
    %c0_7 = arith.constant 0 : index
    %c0_8 = arith.constant 0 : index
    %10 = vector.load %arg5[%c0_7, %c0_8] : memref<11x320xbf16, #tpu.memory_space<vmem>>, vector<11x320xbf16>
    %cst_9 = arith.constant dense<0.000000e+00> : vector<11x256xf32>
    %11 = tpu.matmul %10, %9, %cst_9 {dimension_numbers = #tpu.dot_dimension_numbers<[1], [0], [0], [1], [0, 0, 1, 1], [], []>} : vector<11x320xbf16>, vector<320x256xbf16>, vector<11x256xf32> -> vector<11x256xf32>
    %c0_10 = arith.constant 0 : index
    %c0_11 = arith.constant 0 : index
    %12 = vector.load %arg6[%c0_10, %c0_11] : memref<11x1xf32, #tpu.memory_space<vmem>>, vector<11x1xf32>
    %13 = vector.broadcast %12 : vector<11x1xf32> to vector<11x256xf32>
    %14 = arith.addf %11, %13 : vector<11x256xf32>
    %15 = vector.extract_strided_slice %14 {offsets = [0, 0], sizes = [3, 256], strides = [1, 1]} : vector<11x256xf32> to vector<3x256xf32>
    %c0_12 = arith.constant 0 : index
    %c0_13 = arith.constant 0 : index
    %c0_14 = arith.constant 0 : index
    %16 = vector.load %arg7[%c0_12, %c0_13, %c0_14] : memref<1x3x256xf32, #tpu.memory_space<vmem>>, vector<1x3x256xf32>
    %17 = vector.shape_cast %16 : vector<1x3x256xf32> to vector<3x256xf32>
    %18 = vector.shape_cast %15 : vector<3x256xf32> to vector<1x3x256xf32>
    tpu.vector_store %arg7[%c0_12, %c0_13, %c0_14], %18 {strides = array<i32>} : memref<1x3x256xf32, #tpu.memory_space<vmem>>, vector<1x3x256xf32>,
    %19 = vector.extract_strided_slice %14 {offsets = [3, 0], sizes = [1, 256], strides = [1, 1]} : vector<11x256xf32> to vector<1x256xf32>
    %c0_15 = arith.constant 0 : index
    %c0_16 = arith.constant 0 : index
    %c0_17 = arith.constant 0 : index
    %20 = vector.load %arg8[%c0_15, %c0_16, %c0_17] : memref<1x1x256xf32, #tpu.memory_space<vmem>>, vector<1x1x256xf32>
    %21 = vector.shape_cast %20 : vector<1x1x256xf32> to vector<1x256xf32>
    %22 = vector.shape_cast %19 : vector<1x256xf32> to vector<1x1x256xf32>
    tpu.vector_store %arg8[%c0_15, %c0_16, %c0_17], %22 {strides = array<i32>} : memref<1x1x256xf32, #tpu.memory_space<vmem>>, vector<1x1x256xf32>,
    %23 = vector.extract_strided_slice %14 {offsets = [4, 0], sizes = [3, 256], strides = [1, 1]} : vector<11x256xf32> to vector<3x256xf32>
    %c0_18 = arith.constant 0 : index
    %c0_19 = arith.constant 0 : index
    %c0_20 = arith.constant 0 : index
    %24 = vector.load %arg9[%c0_18, %c0_19, %c0_20] : memref<1x3x256xf32, #tpu.memory_space<vmem>>, vector<1x3x256xf32>
    %25 = vector.shape_cast %24 : vector<1x3x256xf32> to vector<3x256xf32>
    %26 = vector.shape_cast %23 : vector<3x256xf32> to vector<1x3x256xf32>
    tpu.vector_store %arg9[%c0_18, %c0_19, %c0_20], %26 {strides = array<i32>} : memref<1x3x256xf32, #tpu.memory_space<vmem>>, vector<1x3x256xf32>,
    %27 = vector.extract_strided_slice %14 {offsets = [7, 0], sizes = [2, 256], strides = [1, 1]} : vector<11x256xf32> to vector<2x256xf32>
    %c0_21 = arith.constant 0 : index
    %c0_22 = arith.constant 0 : index
    %c0_23 = arith.constant 0 : index
    %28 = vector.load %arg10[%c0_21, %c0_22, %c0_23] : memref<1x2x256xf32, #tpu.memory_space<vmem>>, vector<1x2x256xf32>
    %29 = vector.shape_cast %28 : vector<1x2x256xf32> to vector<2x256xf32>
    %30 = vector.shape_cast %27 : vector<2x256xf32> to vector<1x2x256xf32>
    tpu.vector_store %arg10[%c0_21, %c0_22, %c0_23], %30 {strides = array<i32>} : memref<1x2x256xf32, #tpu.memory_space<vmem>>, vector<1x2x256xf32>,
    %31 = vector.extract_strided_slice %14 {offsets = [9, 0], sizes = [2, 256], strides = [1, 1]} : vector<11x256xf32> to vector<2x256xf32>
    %c0_24 = arith.constant 0 : index
    %c0_25 = arith.constant 0 : index
    %c0_26 = arith.constant 0 : index
    %32 = vector.load %arg11[%c0_24, %c0_25, %c0_26] : memref<1x2x256xf32, #tpu.memory_space<vmem>>, vector<1x2x256xf32>
    %33 = vector.shape_cast %32 : vector<1x2x256xf32> to vector<2x256xf32>
    %34 = vector.shape_cast %31 : vector<2x256xf32> to vector<1x2x256xf32>
    tpu.vector_store %arg11[%c0_24, %c0_25, %c0_26], %34 {strides = array<i32>} : memref<1x2x256xf32, #tpu.memory_space<vmem>>, vector<1x2x256xf32>,
    return
  }
  func.func @transform_0(%arg0: i32, %arg1: i32) -> (i32, i32, i32) {
    %c0_i32 = arith.constant 0 : i32
    %c0_i32_0 = arith.constant 0 : i32
    return %arg0, %c0_i32, %arg1 : i32, i32, i32
  }
  func.func @transform_1(%arg0: i32, %arg1: i32) -> (i32, i32) {
    %c0_i32 = arith.constant 0 : i32
    %c0_i32_0 = arith.constant 0 : i32
    %c0_i32_1 = arith.constant 0 : i32
    return %c0_i32, %c0_i32_0 : i32, i32
  }
  func.func @transform_2(%arg0: i32, %arg1: i32) -> (i32, i32) {
    %c0_i32 = arith.constant 0 : i32
    %c0_i32_0 = arith.constant 0 : i32
    %c0_i32_1 = arith.constant 0 : i32
    return %c0_i32, %c0_i32_0 : i32, i32
  }
  func.func @transform_3(%arg0: i32, %arg1: i32) -> (i32, i32) {
    %c0_i32 = arith.constant 0 : i32
    %c0_i32_0 = arith.constant 0 : i32
    %c0_i32_1 = arith.constant 0 : i32
    return %c0_i32, %c0_i32_0 : i32, i32
  }
  func.func @transform_4(%arg0: i32, %arg1: i32) -> (i32, i32) {
    %c0_i32 = arith.constant 0 : i32
    %c0_i32_0 = arith.constant 0 : i32
    %c0_i32_1 = arith.constant 0 : i32
    return %c0_i32, %c0_i32_0 : i32, i32
  }
  func.func @transform_5(%arg0: i32, %arg1: i32) -> (i32, i32, i32) {
    %c0_i32 = arith.constant 0 : i32
    %c0_i32_0 = arith.constant 0 : i32
    return %arg0, %c0_i32, %arg1 : i32, i32, i32
  }
  func.func @transform_6(%arg0: i32, %arg1: i32) -> (i32, i32, i32) {
    %c0_i32 = arith.constant 0 : i32
    %c0_i32_0 = arith.constant 0 : i32
    return %arg0, %c0_i32, %arg1 : i32, i32, i32
  }
  func.func @transform_7(%arg0: i32, %arg1: i32) -> (i32, i32, i32) {
    %c0_i32 = arith.constant 0 : i32
    %c0_i32_0 = arith.constant 0 : i32
    return %arg0, %c0_i32, %arg1 : i32, i32, i32
  }
  func.func @transform_8(%arg0: i32, %arg1: i32) -> (i32, i32, i32) {
    %c0_i32 = arith.constant 0 : i32
    %c0_i32_0 = arith.constant 0 : i32
    return %arg0, %c0_i32, %arg1 : i32, i32, i32
  }
  func.func @transform_9(%arg0: i32, %arg1: i32) -> (i32, i32, i32) {
    %c0_i32 = arith.constant 0 : i32
    %c0_i32_0 = arith.constant 0 : i32
    return %arg0, %c0_i32, %arg1 : i32, i32, i32
  }
}

</mosaic_0001>

<llo_original>
// kernel: sep_head_forward.1
$region0: #{sep_head_forward.1}
  #allocation0 [shape = 'u32[]', space=smem, size = 0x4, offset = 0x4, fixed_abs, tag = 'smem constant byte address 0x4 - core index']
  #allocation1 [shape = 'u32[144,128]{1,0:T(1,128)}', space=vmem, size = 0x12000, scoped, tag = 'internal scratch']
  %s0 = inlined_call_operand.vmem [shape: bf16[2,8,256], index: 0, kind: input, shape index: {}]
  %s1 = inlined_call_operand.vmem [shape: bf16[320,8], index: 1, kind: input, shape index: {}]
  %s2 = inlined_call_operand.vmem [shape: f32[320,1], index: 2, kind: input, shape index: {}]
  %s3 = inlined_call_operand.vmem [shape: bf16[11,320], index: 3, kind: input, shape index: {}]
  %s4 = inlined_call_operand.vmem [shape: f32[11,1], index: 4, kind: input, shape index: {}]
  %s5 = inlined_call_operand.vmem [shape: f32[2,3,256], index: 5, kind: output, shape index: {0}]
  %s6 = inlined_call_operand.vmem [shape: f32[2,1,256], index: 6, kind: output, shape index: {1}]
  %s7 = inlined_call_operand.vmem [shape: f32[2,3,256], index: 7, kind: output, shape index: {2}]
  %s8 = inlined_call_operand.vmem [shape: f32[2,2,256], index: 8, kind: output, shape index: {3}]
  %s9 = inlined_call_operand.vmem [shape: f32[2,2,256], index: 9, kind: output, shape index: {4}]
  %10 = xla_tuple %s5, %s6, %s7, %s8, %s9
  %s11 = sld [smem:[#allocation0]]
  $region85: #{sep_head_forward.1} parent=0
    _
  %s13 = ssub.s32 1, %s11
  %s14 = scalar_select 0, %s13, %s11
  loop: start=0, step=1, limit=4
  $region2: #{sep_head_forward.1} parent=0 // loop_pre_header
    _
  $region3: #{sep_head_forward.1} parent=0 // loop_header
    %s16 = sphi 0, %s20
    %p17 = scmp.ge.s32.totalorder %s16, 4
    %s23 = sphi 0, %s35
    %s24 = sphi 0, %s31
    %s25 = sphi 0, %s23
    %s26 = sphi 0, %s24
    %s27 = sphi 0, %s25
    %s28 = sphi 0, %s26
    %s40 = sphi 0, %s42
    %s43 = sphi 0, %s40
    %s44 = sphi 0, %s43
    %s60 = sphi 0, %s44
    %s64 = sphi 0, %s64
    %s66 = sphi 0, %s64
    %s67 = sphi 0, %s66
    %s81 = sphi 0, %s67
    %s85 = sphi 0, %s85
    %s87 = sphi 0, %s85
    %s88 = sphi 0, %s87
    %s102 = sphi 0, %s88
    %s106 = sphi 0, %s106
    %s108 = sphi 0, %s106
    %s109 = sphi 0, %s108
    %s123 = sphi 0, %s109
    %s127 = sphi 0, %s127
    %s129 = sphi 0, %s127
    %s130 = sphi 0, %s129
    %s144 = sphi 0, %s130
    %s152 = sphi 0, %s154
    %s155 = sphi 0, %s152
    %s156 = sphi 0, %s155
    %s172 = sphi 0, %s156
    %s180 = sphi 0, %s182
    %s183 = sphi 0, %s180
    %s184 = sphi 0, %s183
    %s200 = sphi 0, %s184
    %s208 = sphi 0, %s210
    %s211 = sphi 0, %s208
    %s212 = sphi 0, %s211
    %s228 = sphi 0, %s212
    %s236 = sphi 0, %s238
    %s239 = sphi 0, %s236
    %s240 = sphi 0, %s239
    %s256 = sphi 0, %s240
    %s264 = sphi 0, %s266
    %s267 = sphi 0, %s264
    %s268 = sphi 0, %s267
    %s284 = sphi 0, %s268
  $region4: #{sep_head_forward.1} parent=0 // loop_header_branch
    %19 = sbr.rel (%p17) target = $region8
  $region5: #{sep_head_forward.1} parent=0 // loop_body
    %s21 = ssub.s32 %s16, 1
    %s22 = ssub.s32 %s16, 2
    %s29 = sadd.s32 1, %s24
    %p30 = scmp.ge.s32.totalorder %s29, 1
    %s31 = scalar_select %p30, 0, %s29
    %s32 = sadd.s32 1, %s23
    %s33 = scalar_select %p30, %s32, %s23
    %p34 = scmp.ge.s32.totalorder %s33, 2
    %s35 = scalar_select %p34, 0, %s33
    %s36 = ssub.s32 %s23, %s35
    %s37 = ssub.s32 %s24, %s31
    %s38 = sor.u32 %s36, %s37
    %p39 = scmp.eq.s32.totalorder %s38, 0
    %s41 = sadd.s32 %s40, 1
    %s42 = scalar_select %p39, %s40, %s41
    %p45 = pneg %p39
    %p46 = scmp.eq.s32.totalorder %s16, 1
    %p47 = por %p45, %p46
    %p48 = scmp.ne.s32.totalorder %s40, %s43
    %p49 = scmp.eq.s32.totalorder %s16, 0
    %p50 = por %p48, %p49
    %p51 = scmp.ne.s32.totalorder %s40, %s43
    %p52 = scmp.eq.s32.totalorder %s21, 1
    %p53 = por %p51, %p52
    %p54 = scmp.ne.s32.totalorder %s43, %s44
    %p55 = scmp.eq.s32.totalorder %s21, 0
    %p56 = por %p54, %p55
    %p57 = scmp.ne.s32.totalorder %s43, %s44
    %p58 = scmp.eq.s32.totalorder %s22, 1
    %p59 = por %p57, %p58
    %p61 = scmp.ne.s32.totalorder %s44, %s60
    %p62 = scmp.eq.s32.totalorder %s22, 0
    %p63 = por %p61, %p62
    %s65 = sadd.s32 %s64, 1
    %p68 = scmp.eq.s32.totalorder %s16, 1
    %p69 = scmp.ne.s32.totalorder %s64, %s66
    %p70 = scmp.eq.s32.totalorder %s16, 0
    %p71 = por %p69, %p70
    %p72 = scmp.ne.s32.totalorder %s64, %s66
    %p73 = scmp.eq.s32.totalorder %s21, 1
    %p74 = por %p72, %p73
    %p75 = scmp.ne.s32.totalorder %s66, %s67
    %p76 = scmp.eq.s32.totalorder %s21, 0
    %p77 = por %p75, %p76
    %p78 = scmp.ne.s32.totalorder %s66, %s67
    %p79 = scmp.eq.s32.totalorder %s22, 1
    %p80 = por %p78, %p79
    %p82 = scmp.ne.s32.totalorder %s67, %s81
    %p83 = scmp.eq.s32.totalorder %s22, 0
    %p84 = por %p82, %p83
    %s86 = sadd.s32 %s85, 1
    %p89 = scmp.eq.s32.totalorder %s16, 1
    %p90 = scmp.ne.s32.totalorder %s85, %s87
    %p91 = scmp.eq.s32.totalorder %s16, 0
    %p92 = por %p90, %p91
    %p93 = scmp.ne.s32.totalorder %s85, %s87
    %p94 = scmp.eq.s32.totalorder %s21, 1
    %p95 = por %p93, %p94
    %p96 = scmp.ne.s32.totalorder %s87, %s88
    %p97 = scmp.eq.s32.totalorder %s21, 0
    %p98 = por %p96, %p97
    %p99 = scmp.ne.s32.totalorder %s87, %s88
    %p100 = scmp.eq.s32.totalorder %s22, 1
    %p101 = por %p99, %p100
    %p103 = scmp.ne.s32.totalorder %s88, %s102
    %p104 = scmp.eq.s32.totalorder %s22, 0
    %p105 = por %p103, %p104
    %s107 = sadd.s32 %s106, 1
    %p110 = scmp.eq.s32.totalorder %s16, 1
    %p111 = scmp.ne.s32.totalorder %s106, %s108
    %p112 = scmp.eq.s32.totalorder %s16, 0
    %p113 = por %p111, %p112
    %p114 = scmp.ne.s32.totalorder %s106, %s108
    %p115 = scmp.eq.s32.totalorder %s21, 1
    %p116 = por %p114, %p115
    %p117 = scmp.ne.s32.totalorder %s108, %s109
    %p118 = scmp.eq.s32.totalorder %s21, 0
    %p119 = por %p117, %p118
    %p120 = scmp.ne.s32.totalorder %s108, %s109
    %p121 = scmp.eq.s32.totalorder %s22, 1
    %p122 = por %p120, %p121
    %p124 = scmp.ne.s32.totalorder %s109, %s123
    %p125 = scmp.eq.s32.totalorder %s22, 0
    %p126 = por %p124, %p125
    %s128 = sadd.s32 %s127, 1
    %p131 = scmp.eq.s32.totalorder %s16, 1
    %p132 = scmp.ne.s32.totalorder %s127, %s129
    %p133 = scmp.eq.s32.totalorder %s16, 0
    %p134 = por %p132, %p133
    %p135 = scmp.ne.s32.totalorder %s127, %s129
    %p136 = scmp.eq.s32.totalorder %s21, 1
    %p137 = por %p135, %p136
    %p138 = scmp.ne.s32.totalorder %s129, %s130
    %p139 = scmp.eq.s32.totalorder %s21, 0
    %p140 = por %p138, %p139
    %p141 = scmp.ne.s32.totalorder %s129, %s130
    %p142 = scmp.eq.s32.totalorder %s22, 1
    %p143 = por %p141, %p142
    %p145 = scmp.ne.s32.totalorder %s130, %s144
    %p146 = scmp.eq.s32.totalorder %s22, 0
    %p147 = por %p145, %p146
    %s148 = ssub.s32 %s23, %s35
    %s149 = ssub.s32 %s24, %s31
    %s150 = sor.u32 %s148, %s149
    %p151 = scmp.eq.s32.totalorder %s150, 0
    %s153 = sadd.s32 %s152, 1
    %s154 = scalar_select %p151, %s152, %s153
    %p157 = pneg %p151
    %p158 = scmp.eq.s32.totalorder %s16, 1
    %p159 = por %p157, %p158
    %p160 = scmp.ne.s32.totalorder %s152, %s155
    %p161 = scmp.eq.s32.totalorder %s16, 0
    %p162 = por %p160, %p161
    %p163 = scmp.ne.s32.totalorder %s152, %s155
    %p164 = scmp.eq.s32.totalorder %s21, 1
    %p165 = por %p163, %p164
    %p166 = scmp.ne.s32.totalorder %s155, %s156
    %p167 = scmp.eq.s32.totalorder %s21, 0
    %p168 = por %p166, %p167
    %p169 = scmp.ne.s32.totalorder %s155, %s156
    %p170 = scmp.eq.s32.totalorder %s22, 1
    %p171 = por %p169, %p170
    %p173 = scmp.ne.s32.totalorder %s156, %s172
    %p174 = scmp.eq.s32.totalorder %s22, 0
    %p175 = por %p173, %p174
    %s176 = ssub.s32 %s23, %s35
    %s177 = ssub.s32 %s24, %s31
    %s178 = sor.u32 %s176, %s177
    %p179 = scmp.eq.s32.totalorder %s178, 0
    %s181 = sadd.s32 %s180, 1
    %s182 = scalar_select %p179, %s180, %s181
    %p185 = pneg %p179
    %p186 = scmp.eq.s32.totalorder %s16, 1
    %p187 = por %p185, %p186
    %p188 = scmp.ne.s32.totalorder %s180, %s183
    %p189 = scmp.eq.s32.totalorder %s16, 0
    %p190 = por %p188, %p189
    %p191 = scmp.ne.s32.totalorder %s180, %s183
    %p192 = scmp.eq.s32.totalorder %s21, 1
    %p193 = por %p191, %p192
    %p194 = scmp.ne.s32.totalorder %s183, %s184
    %p195 = scmp.eq.s32.totalorder %s21, 0
    %p196 = por %p194, %p195
    %p197 = scmp.ne.s32.totalorder %s183, %s184
    %p198 = scmp.eq.s32.totalorder %s22, 1
    %p199 = por %p197, %p198
    %p201 = scmp.ne.s32.totalorder %s184, %s200
    %p202 = scmp.eq.s32.totalorder %s22, 0
    %p203 = por %p201, %p202
    %s204 = ssub.s32 %s23, %s35
    %s205 = ssub.s32 %s24, %s31
    %s206 = sor.u32 %s204, %s205
    %p207 = scmp.eq.s32.totalorder %s206, 0
    %s209 = sadd.s32 %s208, 1
    %s210 = scalar_select %p207, %s208, %s209
    %p213 = pneg %p207
    %p214 = scmp.eq.s32.totalorder %s16, 1
    %p215 = por %p213, %p214
    %p216 = scmp.ne.s32.totalorder %s208, %s211
    %p217 = scmp.eq.s32.totalorder %s16, 0
    %p218 = por %p216, %p217
    %p219 = scmp.ne.s32.totalorder %s208, %s211
    %p220 = scmp.eq.s32.totalorder %s21, 1
    %p221 = por %p219, %p220
    %p222 = scmp.ne.s32.totalorder %s211, %s212
    %p223 = scmp.eq.s32.totalorder %s21, 0
    %p224 = por %p222, %p223
    %p225 = scmp.ne.s32.totalorder %s211, %s212
    %p226 = scmp.eq.s32.totalorder %s22, 1
    %p227 = por %p225, %p226
    %p229 = scmp.ne.s32.totalorder %s212, %s228
    %p230 = scmp.eq.s32.totalorder %s22, 0
    %p231 = por %p229, %p230
    %s232 = ssub.s32 %s23, %s35
    %s233 = ssub.s32 %s24, %s31
    %s234 = sor.u32 %s232, %s233
    %p235 = scmp.eq.s32.totalorder %s234, 0
    %s237 = sadd.s32 %s236, 1
    %s238 = scalar_select %p235, %s236, %s237
    %p241 = pneg %p235
    %p242 = scmp.eq.s32.totalorder %s16, 1
    %p243 = por %p241, %p242
    %p244 = scmp.ne.s32.totalorder %s236, %s239
    %p245 = scmp.eq.s32.totalorder %s16, 0
    %p246 = por %p244, %p245
    %p247 = scmp.ne.s32.totalorder %s236, %s239
    %p248 = scmp.eq.s32.totalorder %s21, 1
    %p249 = por %p247, %p248
    %p250 = scmp.ne.s32.totalorder %s239, %s240
    %p251 = scmp.eq.s32.totalorder %s21, 0
    %p252 = por %p250, %p251
    %p253 = scmp.ne.s32.totalorder %s239, %s240
    %p254 = scmp.eq.s32.totalorder %s22, 1
    %p255 = por %p253, %p254
    %p257 = scmp.ne.s32.totalorder %s240, %s256
    %p258 = scmp.eq.s32.totalorder %s22, 0
    %p259 = por %p257, %p258
    %s260 = ssub.s32 %s23, %s35
    %s261 = ssub.s32 %s24, %s31
    %s262 = sor.u32 %s260, %s261
    %p263 = scmp.eq.s32.totalorder %s262, 0
    %s265 = sadd.s32 %s264, 1
    %s266 = scalar_select %p263, %s264, %s265
    %p269 = pneg %p263
    %p270 = scmp.eq.s32.totalorder %s16, 1
    %p271 = por %p269, %p270
    %p272 = scmp.ne.s32.totalorder %s264, %s267
    %p273 = scmp.eq.s32.totalorder %s16, 0
    %p274 = por %p272, %p273
    %p275 = scmp.ne.s32.totalorder %s264, %s267
    %p276 = scmp.eq.s32.totalorder %s21, 1
    %p277 = por %p275, %p276
    %p278 = scmp.ne.s32.totalorder %s267, %s268
    %p279 = scmp.eq.s32.totalorder %s21, 0
    %p280 = por %p278, %p279
    %p281 = scmp.ne.s32.totalorder %s267, %s268
    %p282 = scmp.eq.s32.totalorder %s22, 1
    %p283 = por %p281, %p282
    %p285 = scmp.ne.s32.totalorder %s268, %s284
    %p286 = scmp.eq.s32.totalorder %s22, 0
    %p287 = por %p285, %p286
    %p288 = scmp.le.s32.totalorder 1, %s16
    %p289 = scmp.lt.s32.totalorder %s16, 3
    %p290 = pnand %p288, %p289
    %p291 = pneg %p290
    // Predicated region
    $region9: #{sep_head_forward.1} parent=5 // pred_check
      _
    $region10: #{sep_head_forward.1} parent=5 // pred_check_branch
      %293 = sbr.rel (%p290) target = $region12
    $region11: #{sep_head_forward.1} parent=5 // pred_region
      %s294 = ssub.s32 %s16, 1
      // Predicated region
      $region13: #{sep_head_forward.1} parent=11 // pred_check
        %p295 = pneg %p77
      $region14: #{sep_head_forward.1} parent=11 // pred_check_branch
        %297 = sbr.rel (%p295) target = $region16
      $region15: #{sep_head_forward.1} parent=11 // pred_region
        _
      $region16: #{sep_head_forward.1} parent=11 // pred_fallthru
        _
      // Predicated region
      $region17: #{sep_head_forward.1} parent=11 // pred_check
        %p298 = pneg %p98
      $region18: #{sep_head_forward.1} parent=11 // pred_check_branch
        %300 = sbr.rel (%p298) target = $region20
      $region19: #{sep_head_forward.1} parent=11 // pred_region
        _
      $region20: #{sep_head_forward.1} parent=11 // pred_fallthru
        _
      // Predicated region
      $region21: #{sep_head_forward.1} parent=11 // pred_check
        %p301 = pneg %p119
      $region22: #{sep_head_forward.1} parent=11 // pred_check_branch
        %303 = sbr.rel (%p301) target = $region24
      $region23: #{sep_head_forward.1} parent=11 // pred_region
        _
      $region24: #{sep_head_forward.1} parent=11 // pred_fallthru
        _
      // Predicated region
      $region25: #{sep_head_forward.1} parent=11 // pred_check
        %p304 = pneg %p140
      $region26: #{sep_head_forward.1} parent=11 // pred_check_branch
        %306 = sbr.rel (%p304) target = $region28
      $region27: #{sep_head_forward.1} parent=11 // pred_region
        _
      $region28: #{sep_head_forward.1} parent=11 // pred_fallthru
        _
    $region12: #{sep_head_forward.1} parent=5 // pred_fallthru
      _
    %p307 = scmp.lt.s32.totalorder %s16, 2
    // Predicated region
    $region29: #{sep_head_forward.1} parent=5 // pred_check
      %p308 = pneg %p307
    $region30: #{sep_head_forward.1} parent=5 // pred_check_branch
      %310 = sbr.rel (%p308) target = $region32
    $region31: #{sep_head_forward.1} parent=5 // pred_region
      // Predicated region
      $region33: #{sep_head_forward.1} parent=31 // pred_check
        %p311 = pneg %p50
      $region34: #{sep_head_forward.1} parent=31 // pred_check_branch
        %313 = sbr.rel (%p311) target = $region36
      $region35: #{sep_head_forward.1} parent=31 // pred_region
        %s314 = smul.u32 2, %s24
        %p315 = scmp.lt.s32.totalorder %s23, 1
        %s316 = scalar_select %p315, %s23, 1
        %p317 = scmp.lt.s32.totalorder %s314, 1
        %s318 = scalar_select %p317, %s314, 1
        %s319 = smul.addr %s316, 2
        %s320 = sadd.s32 %s318, %s319
        %s321 = smul.addr %s320, 4
        %s322 = scalar_lea.vmem %s0, %s321
        %s323 = smul.u32 2, %s24
      $region36: #{sep_head_forward.1} parent=31 // pred_fallthru
        _
    $region32: #{sep_head_forward.1} parent=5 // pred_fallthru
      _
    %p324 = scmp.le.s32.totalorder 1, %s16
    %p325 = scmp.lt.s32.totalorder %s16, 3
    %p326 = pnand %p324, %p325
    %p327 = pneg %p326
    // Predicated region
    $region37: #{sep_head_forward.1} parent=5 // pred_check
      _
    $region38: #{sep_head_forward.1} parent=5 // pred_check_branch
      %329 = sbr.rel (%p326) target = $region40
    $region39: #{sep_head_forward.1} parent=5 // pred_region
      %s330 = ssub.s32 %s16, 1
      %s331 = smul.u32 2, %s26
      %p332 = scmp.lt.s32.totalorder %s25, 1
      %s333 = scalar_select %p332, %s25, 1
      %p334 = scmp.lt.s32.totalorder %s331, 1
      %s335 = scalar_select %p334, %s331, 1
      %s336 = smul.addr %s333, 2
      %s337 = sadd.s32 %s335, %s336
      %s338 = smul.addr %s337, 4
      %s339 = scalar_lea.vmem %s0, %s338
      %p340 = pneg %p56
      %p341 = pneg %p53
      %p342 = pneg %p77
      %p343 = pneg %p74
      %p344 = pneg %p98
      %p345 = pneg %p95
      %p346 = pneg %p119
      %p347 = pneg %p116
      %p348 = pneg %p140
      %p349 = pneg %p137
      %p350 = pneg %p168
      %p351 = pneg %p165
      %s352 = smul.u32 2, %s26
      %p353 = scmp.lt.s32.totalorder %s25, 1
      %s354 = scalar_select %p353, %s25, 1
      %p355 = scmp.lt.s32.totalorder %s352, 1
      %s356 = scalar_select %p355, %s352, 1
      %s357 = smul.addr %s354, 2
      %s358 = sadd.s32 %s356, %s357
      %s359 = smul.addr %s358, 4
      %s360 = scalar_lea.vmem %s5, %s359
      %p361 = pneg %p196
      %p362 = pneg %p193
      %s363 = smul.u32 2, %s26
      %p364 = scmp.lt.s32.totalorder %s25, 1
      %s365 = scalar_select %p364, %s25, 1
      %p366 = scmp.lt.s32.totalorder %s363, 1
      %s367 = scalar_select %p366, %s363, 1
      %s368 = smul.addr %s365, 2
      %s369 = sadd.s32 %s367, %s368
      %s370 = scalar_lea.vmem %s6, %s369
      %p371 = pneg %p224
      %p372 = pneg %p221
      %s373 = smul.u32 2, %s26
      %p374 = scmp.lt.s32.totalorder %s25, 1
      %s375 = scalar_select %p374, %s25, 1
      %p376 = scmp.lt.s32.totalorder %s373, 1
      %s377 = scalar_select %p376, %s373, 1
      %s378 = smul.addr %s375, 2
      %s379 = sadd.s32 %s377, %s378
      %s380 = smul.addr %s379, 4
      %s381 = scalar_lea.vmem %s7, %s380
      %p382 = pneg %p252
      %p383 = pneg %p249
      %s384 = smul.u32 2, %s26
      %p385 = scmp.lt.s32.totalorder %s25, 1
      %s386 = scalar_select %p385, %s25, 1
      %p387 = scmp.lt.s32.totalorder %s384, 1
      %s388 = scalar_select %p387, %s384, 1
      %s389 = smul.addr %s386, 2
      %s390 = sadd.s32 %s388, %s389
      %s391 = smul.addr %s390, 2
      %s392 = scalar_lea.vmem %s8, %s391
      %p393 = pneg %p280
      %p394 = pneg %p277
      %s395 = smul.u32 2, %s26
      %p396 = scmp.lt.s32.totalorder %s25, 1
      %s397 = scalar_select %p396, %s25, 1
      %p398 = scmp.lt.s32.totalorder %s395, 1
      %s399 = scalar_select %p398, %s395, 1
      %s400 = smul.addr %s397, 2
      %s401 = sadd.s32 %s399, %s400
      %s402 = smul.addr %s401, 2
      %s403 = scalar_lea.vmem %s9, %s402
      %s404 = smul.u32 2, %s26
      %p405 = scmp.lt.s32.totalorder %s25, 1
      %s406 = scalar_select %p405, %s25, 1
      %p407 = scmp.lt.s32.totalorder %s404, 1
      %s408 = scalar_select %p407, %s404, 1
      %s409 = smul.addr %s406, 2
      %s410 = sadd.s32 %s408, %s409
      %s411 = smul.addr %s410, 4
      %s412 = scalar_lea.vmem %s0, %s411
      %s413 = smul.u32 2, %s26
      %s414 = smul.u32 2, %s26
      %p415 = scmp.lt.s32.totalorder %s25, 1
      %s416 = scalar_select %p415, %s25, 1
      %p417 = scmp.lt.s32.totalorder %s414, 1
      %s418 = scalar_select %p417, %s414, 1
      %s419 = smul.addr %s416, 2
      %s420 = sadd.s32 %s418, %s419
      %s421 = smul.addr %s420, 4
      %s422 = scalar_lea.vmem %s5, %s421
      %s423 = smul.u32 2, %s26
      %s424 = smul.u32 2, %s26
      %p425 = scmp.lt.s32.totalorder %s25, 1
      %s426 = scalar_select %p425, %s25, 1
      %p427 = scmp.lt.s32.totalorder %s424, 1
      %s428 = scalar_select %p427, %s424, 1
      %s429 = smul.addr %s426, 2
      %s430 = sadd.s32 %s428, %s429
      %s431 = scalar_lea.vmem %s6, %s430
      %s432 = smul.u32 2, %s26
      %s433 = smul.u32 2, %s26
      %p434 = scmp.lt.s32.totalorder %s25, 1
      %s435 = scalar_select %p434, %s25, 1
      %p436 = scmp.lt.s32.totalorder %s433, 1
      %s437 = scalar_select %p436, %s433, 1
      %s438 = smul.addr %s435, 2
      %s439 = sadd.s32 %s437, %s438
      %s440 = smul.addr %s439, 4
      %s441 = scalar_lea.vmem %s7, %s440
      %s442 = smul.u32 2, %s26
      %s443 = smul.u32 2, %s26
      %p444 = scmp.lt.s32.totalorder %s25, 1
      %s445 = scalar_select %p444, %s25, 1
      %p446 = scmp.lt.s32.totalorder %s443, 1
      %s447 = scalar_select %p446, %s443, 1
      %s448 = smul.addr %s445, 2
      %s449 = sadd.s32 %s447, %s448
      %s450 = smul.addr %s449, 2
      %s451 = scalar_lea.vmem %s8, %s450
      %s452 = smul.u32 2, %s26
      %s453 = smul.u32 2, %s26
      %p454 = scmp.lt.s32.totalorder %s25, 1
      %s455 = scalar_select %p454, %s25, 1
      %p456 = scmp.lt.s32.totalorder %s453, 1
      %s457 = scalar_select %p456, %s453, 1
      %s458 = smul.addr %s455, 2
      %s459 = sadd.s32 %s457, %s458
      %s460 = smul.addr %s459, 2
      %s461 = scalar_lea.vmem %s9, %s460
      %s462 = smul.u32 2, %s26
      %v464 = vld [vmem:[%s412] sm:$0xff]
      %v465 = vld [vmem:[%s1] sm:$0xf]
      %v466 = vld [vmem:[%s1 + $0x4] sm:$0xf]
      %v467 = vld [vmem:[%s1 + $0x8] sm:$0xf]
      %v468 = vld [vmem:[%s1 + $0xc] sm:$0xf]
      %v469 = vld [vmem:[%s1 + $0x10] sm:$0xf]
      %v470 = vld [vmem:[%s1 + $0x14] sm:$0xf]
      %v471 = vld [vmem:[%s1 + $0x18] sm:$0xf]
      %v472 = vld [vmem:[%s1 + $0x1c] sm:$0xf]
      %v473 = vld [vmem:[%s1 + $0x20] sm:$0xf]
      %v474 = vld [vmem:[%s1 + $0x24] sm:$0xf]
      %v475 = vld [vmem:[%s1 + $0x28] sm:$0xf]
      %v476 = vld [vmem:[%s1 + $0x2c] sm:$0xf]
      %v477 = vld [vmem:[%s1 + $0x30] sm:$0xf]
      %v478 = vld [vmem:[%s1 + $0x34] sm:$0xf]
      %v479 = vld [vmem:[%s1 + $0x38] sm:$0xf]
      %v480 = vld [vmem:[%s1 + $0x3c] sm:$0xf]
      %v481 = vld [vmem:[%s1 + $0x40] sm:$0xf]
      %v482 = vld [vmem:[%s1 + $0x44] sm:$0xf]
      %v483 = vld [vmem:[%s1 + $0x48] sm:$0xf]
      %v484 = vld [vmem:[%s1 + $0x4c] sm:$0xf]
      %v485 = vld [vmem:[%s1 + $0x50] sm:$0xf]
      %v486 = vld [vmem:[%s1 + $0x54] sm:$0xf]
      %v487 = vld [vmem:[%s1 + $0x58] sm:$0xf]
      %v488 = vld [vmem:[%s1 + $0x5c] sm:$0xf]
      %v489 = vld [vmem:[%s1 + $0x60] sm:$0xf]
      %v490 = vld [vmem:[%s1 + $0x64] sm:$0xf]
      %v491 = vld [vmem:[%s1 + $0x68] sm:$0xf]
      %v492 = vld [vmem:[%s1 + $0x6c] sm:$0xf]
      %v493 = vld [vmem:[%s1 + $0x70] sm:$0xf]
      %v494 = vld [vmem:[%s1 + $0x74] sm:$0xf]
      %v495 = vld [vmem:[%s1 + $0x78] sm:$0xf]
      %v496 = vld [vmem:[%s1 + $0x7c] sm:$0xf]
      %v497 = vld [vmem:[%s1 + $0x80] sm:$0xf]
      %v498 = vld [vmem:[%s1 + $0x84] sm:$0xf]
      %v499 = vld [vmem:[%s1 + $0x88] sm:$0xf]
      %v500 = vld [vmem:[%s1 + $0x8c] sm:$0xf]
      %v501 = vld [vmem:[%s1 + $0x90] sm:$0xf]
      %v502 = vld [vmem:[%s1 + $0x94] sm:$0xf]
      %v503 = vld [vmem:[%s1 + $0x98] sm:$0xf]
      %v504 = vld [vmem:[%s1 + $0x9c] sm:$0xf]
      %v505 = vld [vmem:[%s2] sm:$0xff]
      %v506 = vld [vmem:[%s2 + $0x8] sm:$0xff]
      %v507 = vld [vmem:[%s2 + $0x10] sm:$0xff]
      %v508 = vld [vmem:[%s2 + $0x18] sm:$0xff]
      %v509 = vld [vmem:[%s2 + $0x20] sm:$0xff]
      %v510 = vld [vmem:[%s2 + $0x28] sm:$0xff]
      %v511 = vld [vmem:[%s2 + $0x30] sm:$0xff]
      %v512 = vld [vmem:[%s2 + $0x38] sm:$0xff]
      %v513 = vld [vmem:[%s2 + $0x40] sm:$0xff]
      %v514 = vld [vmem:[%s2 + $0x48] sm:$0xff]
      %v515 = vld [vmem:[%s2 + $0x50] sm:$0xff]
      %v516 = vld [vmem:[%s2 + $0x58] sm:$0xff]
      %v517 = vld [vmem:[%s2 + $0x60] sm:$0xff]
      %v518 = vld [vmem:[%s2 + $0x68] sm:$0xff]
      %v519 = vld [vmem:[%s2 + $0x70] sm:$0xff]
      %v520 = vld [vmem:[%s2 + $0x78] sm:$0xff]
      %v521 = vld [vmem:[%s2 + $0x80] sm:$0xff]
      %v522 = vld [vmem:[%s2 + $0x88] sm:$0xff]
      %v523 = vld [vmem:[%s2 + $0x90] sm:$0xff]
      %v524 = vld [vmem:[%s2 + $0x98] sm:$0xff]
      %v525 = vld [vmem:[%s2 + $0xa0] sm:$0xff]
      %v526 = vld [vmem:[%s2 + $0xa8] sm:$0xff]
      %v527 = vld [vmem:[%s2 + $0xb0] sm:$0xff]
      %v528 = vld [vmem:[%s2 + $0xb8] sm:$0xff]
      %v529 = vld [vmem:[%s2 + $0xc0] sm:$0xff]
      %v530 = vld [vmem:[%s2 + $0xc8] sm:$0xff]
      %v531 = vld [vmem:[%s2 + $0xd0] sm:$0xff]
      %v532 = vld [vmem:[%s2 + $0xd8] sm:$0xff]
      %v533 = vld [vmem:[%s2 + $0xe0] sm:$0xff]
      %v534 = vld [vmem:[%s2 + $0xe8] sm:$0xff]
      %v535 = vld [vmem:[%s2 + $0xf0] sm:$0xff]
      %v536 = vld [vmem:[%s2 + $0xf8] sm:$0xff]
      %v537 = vld [vmem:[%s2 + $0x100] sm:$0xff]
      %v538 = vld [vmem:[%s2 + $0x108] sm:$0xff]
      %v539 = vld [vmem:[%s2 + $0x110] sm:$0xff]
      %v540 = vld [vmem:[%s2 + $0x118] sm:$0xff]
      %v541 = vld [vmem:[%s2 + $0x120] sm:$0xff]
      %v542 = vld [vmem:[%s2 + $0x128] sm:$0xff]
      %v543 = vld [vmem:[%s2 + $0x130] sm:$0xff]
      %v544 = vld [vmem:[%s2 + $0x138] sm:$0xff]
      %546 = vset.pattern.permute.xlu0 0
      %547 = vperm.xlu0 %546, %v505
      %v548 = vpop.permute.xlu0 %547
      %551 = vset.pattern.permute.xlu0 0
      %552 = vperm.xlu0 %551, %v506
      %v553 = vpop.permute.xlu0 %552
      %556 = vset.pattern.permute.xlu0 0
      %557 = vperm.xlu0 %556, %v507
      %v558 = vpop.permute.xlu0 %557
      %561 = vset.pattern.permute.xlu0 0
      %562 = vperm.xlu0 %561, %v508
      %v563 = vpop.permute.xlu0 %562
      %566 = vset.pattern.permute.xlu0 0
      %567 = vperm.xlu0 %566, %v509
      %v568 = vpop.permute.xlu0 %567
      %571 = vset.pattern.permute.xlu0 0
      %572 = vperm.xlu0 %571, %v510
      %v573 = vpop.permute.xlu0 %572
      %576 = vset.pattern.permute.xlu0 0
      %577 = vperm.xlu0 %576, %v511
      %v578 = vpop.permute.xlu0 %577
      %581 = vset.pattern.permute.xlu0 0
      %582 = vperm.xlu0 %581, %v512
      %v583 = vpop.permute.xlu0 %582
      %586 = vset.pattern.permute.xlu0 0
      %587 = vperm.xlu0 %586, %v513
      %v588 = vpop.permute.xlu0 %587
      %591 = vset.pattern.permute.xlu0 0
      %592 = vperm.xlu0 %591, %v514
      %v593 = vpop.permute.xlu0 %592
      %596 = vset.pattern.permute.xlu0 0
      %597 = vperm.xlu0 %596, %v515
      %v598 = vpop.permute.xlu0 %597
      %601 = vset.pattern.permute.xlu0 0
      %602 = vperm.xlu0 %601, %v516
      %v603 = vpop.permute.xlu0 %602
      %606 = vset.pattern.permute.xlu0 0
      %607 = vperm.xlu0 %606, %v517
      %v608 = vpop.permute.xlu0 %607
      %611 = vset.pattern.permute.xlu0 0
      %612 = vperm.xlu0 %611, %v518
      %v613 = vpop.permute.xlu0 %612
      %616 = vset.pattern.permute.xlu0 0
      %617 = vperm.xlu0 %616, %v519
      %v618 = vpop.permute.xlu0 %617
      %621 = vset.pattern.permute.xlu0 0
      %622 = vperm.xlu0 %621, %v520
      %v623 = vpop.permute.xlu0 %622
      %626 = vset.pattern.permute.xlu0 0
      %627 = vperm.xlu0 %626, %v521
      %v628 = vpop.permute.xlu0 %627
      %631 = vset.pattern.permute.xlu0 0
      %632 = vperm.xlu0 %631, %v522
      %v633 = vpop.permute.xlu0 %632
      %636 = vset.pattern.permute.xlu0 0
      %637 = vperm.xlu0 %636, %v523
      %v638 = vpop.permute.xlu0 %637
      %641 = vset.pattern.permute.xlu0 0
      %642 = vperm.xlu0 %641, %v524
      %v643 = vpop.permute.xlu0 %642
      %646 = vset.pattern.permute.xlu0 0
      %647 = vperm.xlu0 %646, %v525
      %v648 = vpop.permute.xlu0 %647
      %651 = vset.pattern.permute.xlu0 0
      %652 = vperm.xlu0 %651, %v526
      %v653 = vpop.permute.xlu0 %652
      %656 = vset.pattern.permute.xlu0 0
      %657 = vperm.xlu0 %656, %v527
      %v658 = vpop.permute.xlu0 %657
      %661 = vset.pattern.permute.xlu0 0
      %662 = vperm.xlu0 %661, %v528
      %v663 = vpop.permute.xlu0 %662
      %666 = vset.pattern.permute.xlu0 0
      %667 = vperm.xlu0 %666, %v529
      %v668 = vpop.permute.xlu0 %667
      %671 = vset.pattern.permute.xlu0 0
      %672 = vperm.xlu0 %671, %v530
      %v673 = vpop.permute.xlu0 %672
      %676 = vset.pattern.permute.xlu0 0
      %677 = vperm.xlu0 %676, %v531
      %v678 = vpop.permute.xlu0 %677
      %681 = vset.pattern.permute.xlu0 0
      %682 = vperm.xlu0 %681, %v532
      %v683 = vpop.permute.xlu0 %682
      %686 = vset.pattern.permute.xlu0 0
      %687 = vperm.xlu0 %686, %v533
      %v688 = vpop.permute.xlu0 %687
      %691 = vset.pattern.permute.xlu0 0
      %692 = vperm.xlu0 %691, %v534
      %v693 = vpop.permute.xlu0 %692
      %696 = vset.pattern.permute.xlu0 0
      %697 = vperm.xlu0 %696, %v535
      %v698 = vpop.permute.xlu0 %697
      %701 = vset.pattern.permute.xlu0 0
      %702 = vperm.xlu0 %701, %v536
      %v703 = vpop.permute.xlu0 %702
      %706 = vset.pattern.permute.xlu0 0
      %707 = vperm.xlu0 %706, %v537
      %v708 = vpop.permute.xlu0 %707
      %711 = vset.pattern.permute.xlu0 0
      %712 = vperm.xlu0 %711, %v538
      %v713 = vpop.permute.xlu0 %712
      %716 = vset.pattern.permute.xlu0 0
      %717 = vperm.xlu0 %716, %v539
      %v718 = vpop.permute.xlu0 %717
      %721 = vset.pattern.permute.xlu0 0
      %722 = vperm.xlu0 %721, %v540
      %v723 = vpop.permute.xlu0 %722
      %726 = vset.pattern.permute.xlu0 0
      %727 = vperm.xlu0 %726, %v541
      %v728 = vpop.permute.xlu0 %727
      %731 = vset.pattern.permute.xlu0 0
      %732 = vperm.xlu0 %731, %v542
      %v733 = vpop.permute.xlu0 %732
      %736 = vset.pattern.permute.xlu0 0
      %737 = vperm.xlu0 %736, %v543
      %v738 = vpop.permute.xlu0 %737
      %741 = vset.pattern.permute.xlu0 0
      %742 = vperm.xlu0 %741, %v544
      %v743 = vpop.permute.xlu0 %742
      %v785 = vunpack.c.l.b16 %v465
      %v786 = vunpack.c.l.b16 %v466
      %v787 = vunpack.c.l.b16 %v467
      %v788 = vunpack.c.l.b16 %v468
      %v789 = vunpack.c.l.b16 %v469
      %v790 = vunpack.c.l.b16 %v470
      %v791 = vunpack.c.l.b16 %v471
      %v792 = vunpack.c.l.b16 %v472
      %v793 = vunpack.c.l.b16 %v473
      %v794 = vunpack.c.l.b16 %v474
      %v795 = vunpack.c.l.b16 %v475
      %v796 = vunpack.c.l.b16 %v476
      %v797 = vunpack.c.l.b16 %v477
      %v798 = vunpack.c.l.b16 %v478
      %v799 = vunpack.c.l.b16 %v479
      %v800 = vunpack.c.l.b16 %v480
      %v801 = vunpack.c.l.b16 %v481
      %v802 = vunpack.c.l.b16 %v482
      %v803 = vunpack.c.l.b16 %v483
      %v804 = vunpack.c.l.b16 %v484
      %v805 = vunpack.c.l.b16 %v485
      %v806 = vunpack.c.l.b16 %v486
      %v807 = vunpack.c.l.b16 %v487
      %v808 = vunpack.c.l.b16 %v488
      %v809 = vunpack.c.l.b16 %v489
      %v810 = vunpack.c.l.b16 %v490
      %v811 = vunpack.c.l.b16 %v491
      %v812 = vunpack.c.l.b16 %v492
      %v813 = vunpack.c.l.b16 %v493
      %v814 = vunpack.c.l.b16 %v494
      %v815 = vunpack.c.l.b16 %v495
      %v816 = vunpack.c.l.b16 %v496
      %v817 = vunpack.c.l.b16 %v497
      %v818 = vunpack.c.l.b16 %v498
      %v819 = vunpack.c.l.b16 %v499
      %v820 = vunpack.c.l.b16 %v500
      %v821 = vunpack.c.l.b16 %v501
      %v822 = vunpack.c.l.b16 %v502
      %v823 = vunpack.c.l.b16 %v503
      %v824 = vunpack.c.l.b16 %v504
      %v825 = vpack.c.b16 %v786, %v785
      %v826 = vpack.c.b16 %v788, %v787
      %v827 = vpack.c.b16 %v790, %v789
      %v828 = vpack.c.b16 %v792, %v791
      %v829 = vpack.c.b16 %v794, %v793
      %v830 = vpack.c.b16 %v796, %v795
      %v831 = vpack.c.b16 %v798, %v797
      %v832 = vpack.c.b16 %v800, %v799
      %v833 = vpack.c.b16 %v802, %v801
      %v834 = vpack.c.b16 %v804, %v803
      %v835 = vpack.c.b16 %v806, %v805
      %v836 = vpack.c.b16 %v808, %v807
      %v837 = vpack.c.b16 %v810, %v809
      %v838 = vpack.c.b16 %v812, %v811
      %v839 = vpack.c.b16 %v814, %v813
      %v840 = vpack.c.b16 %v816, %v815
      %v841 = vpack.c.b16 %v818, %v817
      %v842 = vpack.c.b16 %v820, %v819
      %v843 = vpack.c.b16 %v822, %v821
      %v844 = vpack.c.b16 %v824, %v823
      %v846 = vunpack.c.l.b16 %v464
      %v847 = vunpack.c.h.b16 %v464
      %v848 = vpack.c.b16 %v846, %v846
      %v849 = vpack.c.b16 %v847, %v847
      %vm850 = vcmask 64512
      %v852 = vsel %vm850, %v825, 0
      %v855 = vsel %vm850, %v826, 0
      %v858 = vsel %vm850, %v827, 0
      %v861 = vsel %vm850, %v828, 0
      %v864 = vsel %vm850, %v829, 0
      %v867 = vsel %vm850, %v830, 0
      %v870 = vsel %vm850, %v831, 0
      %v873 = vsel %vm850, %v832, 0
      %v876 = vsel %vm850, %v833, 0
      %v879 = vsel %vm850, %v834, 0
      %v882 = vsel %vm850, %v835, 0
      %v885 = vsel %vm850, %v836, 0
      %v888 = vsel %vm850, %v837, 0
      %v891 = vsel %vm850, %v838, 0
      %v894 = vsel %vm850, %v839, 0
      %v897 = vsel %vm850, %v840, 0
      %v900 = vsel %vm850, %v841, 0
      %v903 = vsel %vm850, %v842, 0
      %v906 = vsel %vm850, %v843, 0
      %v909 = vsel %vm850, %v844, 0
      %vm911 = vcmask 1043456
      %v913 = vsel %vm911, %v848, 0
      %v916 = vsel %vm911, %v849, 0
      %918 = vmatprep.subr.bf16.mxu0 %v916
      %919 = vmatpush1.bf16.msra.mxu0 %v913
      %920 = vmatprep.subr.bf16.mxu0 0
      %921 = vmatpush1.bf16.msra.mxu0 0
      %922 = vmatprep.subr.bf16.mxu0 0
      %923 = vmatpush1.bf16.msra.mxu0 0
      %924 = vmatprep.subr.bf16.mxu0 0
      %925 = vmatpush1.bf16.msra.mxu0 0
      %926 = vmatprep.subr.bf16.mxu0 0
      %927 = vmatpush1.bf16.msra.mxu0 0
      %928 = vmatprep.subr.bf16.mxu0 0
      %929 = vmatpush1.bf16.msra.mxu0 0
      %930 = vmatprep.subr.bf16.mxu0 0
      %931 = vmatpush1.bf16.msra.mxu0 0
      %932 = vmatprep.subr.bf16.mxu0 0
      %933 = vmatpush1.bf16.msra.mxu0 0
      %934 = vmatprep.subr.bf16.mxu0 0
      %935 = vmatpush1.bf16.msra.mxu0 0
      %936 = vmatprep.subr.bf16.mxu0 0
      %937 = vmatpush1.bf16.msra.mxu0 0
      %938 = vmatprep.subr.bf16.mxu0 0
      %939 = vmatpush1.bf16.msra.mxu0 0
      %940 = vmatprep.subr.bf16.mxu0 0
      %941 = vmatpush1.bf16.msra.mxu0 0
      %942 = vmatprep.subr.bf16.mxu0 0
      %943 = vmatpush1.bf16.msra.mxu0 0
      %944 = vmatprep.subr.bf16.mxu0 0
      %945 = vmatpush1.bf16.msra.mxu0 0
      %946 = vmatprep.subr.bf16.mxu0 0
      %947 = vmatpush1.bf16.msra.mxu0 0
      %948 = vmatprep.subr.bf16.mxu0 0
      %949 = vmatpush1.bf16.msra.mxu0 0
      %950 = vmatprep.mubr.bf16.mxu0 0
      %951 = vmatmul.mubr.bf16.gmra.mrb[0].mxu0 %v852
      %v952 = vpop.f32.mrb[0].mxu0
      %v953 = vadd.f32 %v548, %v952
      %v954 = vpop.f32.mrb[0].mxu0
      %v955 = vadd.f32 %v548, %v954
      %v956 = vpop.f32.mrb[0].mxu0
      %v957 = vadd.f32 %v553, %v956
      %v958 = vpop.f32.mrb[0].mxu0
      %v959 = vadd.f32 %v553, %v958
      %960 = vmatprep.mubr.bf16.mxu0 0
      %961 = vmatmul.mubr.bf16.gmra.mrb[0].mxu0 %v855
      %v962 = vpop.f32.mrb[0].mxu0
      %v963 = vadd.f32 %v558, %v962
      %v964 = vpop.f32.mrb[0].mxu0
      %v965 = vadd.f32 %v558, %v964
      %v966 = vpop.f32.mrb[0].mxu0
      %v967 = vadd.f32 %v563, %v966
      %v968 = vpop.f32.mrb[0].mxu0
      %v969 = vadd.f32 %v563, %v968
      %970 = vmatprep.mubr.bf16.mxu0 0
      %971 = vmatmul.mubr.bf16.gmra.mrb[0].mxu0 %v858
      %v972 = vpop.f32.mrb[0].mxu0
      %v973 = vadd.f32 %v568, %v972
      %v974 = vpop.f32.mrb[0].mxu0
      %v975 = vadd.f32 %v568, %v974
      %v976 = vpop.f32.mrb[0].mxu0
      %v977 = vadd.f32 %v573, %v976
      %v978 = vpop.f32.mrb[0].mxu0
      %v979 = vadd.f32 %v573, %v978
      %980 = vmatprep.mubr.bf16.mxu0 0
      %981 = vmatmul.mubr.bf16.gmra.mrb[0].mxu0 %v861
      %v982 = vpop.f32.mrb[0].mxu0
      %v983 = vadd.f32 %v578, %v982
      %v984 = vpop.f32.mrb[0].mxu0
      %v985 = vadd.f32 %v578, %v984
      %v986 = vpop.f32.mrb[0].mxu0
      %v987 = vadd.f32 %v583, %v986
      %v988 = vpop.f32.mrb[0].mxu0
      %v989 = vadd.f32 %v583, %v988
      %990 = vmatprep.mubr.bf16.mxu0 0
      %991 = vmatmul.mubr.bf16.gmra.mrb[0].mxu0 %v864
      %v992 = vpop.f32.mrb[0].mxu0
      %v993 = vadd.f32 %v588, %v992
      %v994 = vpop.f32.mrb[0].mxu0
      %v995 = vadd.f32 %v588, %v994
      %v996 = vpop.f32.mrb[0].mxu0
      %v997 = vadd.f32 %v593, %v996
      %v998 = vpop.f32.mrb[0].mxu0
      %v999 = vadd.f32 %v593, %v998
      %1000 = vmatprep.mubr.bf16.mxu0 0
      %1001 = vmatmul.mubr.bf16.gmra.mrb[0].mxu0 %v867
      %v1002 = vpop.f32.mrb[0].mxu0
      %v1003 = vadd.f32 %v598, %v1002
      %v1004 = vpop.f32.mrb[0].mxu0
      %v1005 = vadd.f32 %v598, %v1004
      %v1006 = vpop.f32.mrb[0].mxu0
      %v1007 = vadd.f32 %v603, %v1006
      %v1008 = vpop.f32.mrb[0].mxu0
      %v1009 = vadd.f32 %v603, %v1008
      %1010 = vmatprep.mubr.bf16.mxu0 0
      %1011 = vmatmul.mubr.bf16.gmra.mrb[0].mxu0 %v870
      %v1012 = vpop.f32.mrb[0].mxu0
      %v1013 = vadd.f32 %v608, %v1012
      %v1014 = vpop.f32.mrb[0].mxu0
      %v1015 = vadd.f32 %v608, %v1014
      %v1016 = vpop.f32.mrb[0].mxu0
      %v1017 = vadd.f32 %v613, %v1016
      %v1018 = vpop.f32.mrb[0].mxu0
      %v1019 = vadd.f32 %v613, %v1018
      %1020 = vmatprep.mubr.bf16.mxu0 0
      %1021 = vmatmul.mubr.bf16.gmra.mrb[0].mxu0 %v873
      %v1022 = vpop.f32.mrb[0].mxu0
      %v1023 = vadd.f32 %v618, %v1022
      %v1024 = vpop.f32.mrb[0].mxu0
      %v1025 = vadd.f32 %v618, %v1024
      %v1026 = vpop.f32.mrb[0].mxu0
      %v1027 = vadd.f32 %v623, %v1026
      %v1028 = vpop.f32.mrb[0].mxu0
      %v1029 = vadd.f32 %v623, %v1028
      %1030 = vmatprep.mubr.bf16.mxu0 0
      %1031 = vmatmul.mubr.bf16.gmra.mrb[0].mxu0 %v876
      %v1032 = vpop.f32.mrb[0].mxu0
      %v1033 = vadd.f32 %v628, %v1032
      %v1034 = vpop.f32.mrb[0].mxu0
      %v1035 = vadd.f32 %v628, %v1034
      %v1036 = vpop.f32.mrb[0].mxu0
      %v1037 = vadd.f32 %v633, %v1036
      %v1038 = vpop.f32.mrb[0].mxu0
      %v1039 = vadd.f32 %v633, %v1038
      %1040 = vmatprep.mubr.bf16.mxu0 0
      %1041 = vmatmul.mubr.bf16.gmra.mrb[0].mxu0 %v879
      %v1042 = vpop.f32.mrb[0].mxu0
      %v1043 = vadd.f32 %v638, %v1042
      %v1044 = vpop.f32.mrb[0].mxu0
      %v1045 = vadd.f32 %v638, %v1044
      %v1046 = vpop.f32.mrb[0].mxu0
      %v1047 = vadd.f32 %v643, %v1046
      %v1048 = vpop.f32.mrb[0].mxu0
      %v1049 = vadd.f32 %v643, %v1048
      %1050 = vmatprep.mubr.bf16.mxu0 0
      %1051 = vmatmul.mubr.bf16.gmra.mrb[0].mxu0 %v882
      %v1052 = vpop.f32.mrb[0].mxu0
      %v1053 = vadd.f32 %v648, %v1052
      %v1054 = vpop.f32.mrb[0].mxu0
      %v1055 = vadd.f32 %v648, %v1054
      %v1056 = vpop.f32.mrb[0].mxu0
      %v1057 = vadd.f32 %v653, %v1056
      %v1058 = vpop.f32.mrb[0].mxu0
      %v1059 = vadd.f32 %v653, %v1058
      %1060 = vmatprep.mubr.bf16.mxu0 0
      %1061 = vmatmul.mubr.bf16.gmra.mrb[0].mxu0 %v885
      %v1062 = vpop.f32.mrb[0].mxu0
      %v1063 = vadd.f32 %v658, %v1062
      %v1064 = vpop.f32.mrb[0].mxu0
      %v1065 = vadd.f32 %v658, %v1064
      %v1066 = vpop.f32.mrb[0].mxu0
      %v1067 = vadd.f32 %v663, %v1066
      %v1068 = vpop.f32.mrb[0].mxu0
      %v1069 = vadd.f32 %v663, %v1068
      %1070 = vmatprep.mubr.bf16.mxu0 0
      %1071 = vmatmul.mubr.bf16.gmra.mrb[0].mxu0 %v888
      %v1072 = vpop.f32.mrb[0].mxu0
      %v1073 = vadd.f32 %v668, %v1072
      %v1074 = vpop.f32.mrb[0].mxu0
      %v1075 = vadd.f32 %v668, %v1074
      %v1076 = vpop.f32.mrb[0].mxu0
      %v1077 = vadd.f32 %v673, %v1076
      %v1078 = vpop.f32.mrb[0].mxu0
      %v1079 = vadd.f32 %v673, %v1078
      %1080 = vmatprep.mubr.bf16.mxu0 0
      %1081 = vmatmul.mubr.bf16.gmra.mrb[0].mxu0 %v891
      %v1082 = vpop.f32.mrb[0].mxu0
      %v1083 = vadd.f32 %v678, %v1082
      %v1084 = vpop.f32.mrb[0].mxu0
      %v1085 = vadd.f32 %v678, %v1084
      %v1086 = vpop.f32.mrb[0].mxu0
      %v1087 = vadd.f32 %v683, %v1086
      %v1088 = vpop.f32.mrb[0].mxu0
      %v1089 = vadd.f32 %v683, %v1088
      %1090 = vmatprep.mubr.bf16.mxu0 0
      %1091 = vmatmul.mubr.bf16.gmra.mrb[0].mxu0 %v894
      %v1092 = vpop.f32.mrb[0].mxu0
      %v1093 = vadd.f32 %v688, %v1092
      %v1094 = vpop.f32.mrb[0].mxu0
      %v1095 = vadd.f32 %v688, %v1094
      %v1096 = vpop.f32.mrb[0].mxu0
      %v1097 = vadd.f32 %v693, %v1096
      %v1098 = vpop.f32.mrb[0].mxu0
      %v1099 = vadd.f32 %v693, %v1098
      %1100 = vmatprep.mubr.bf16.mxu0 0
      %1101 = vmatmul.mubr.bf16.gmra.mrb[0].mxu0 %v897
      %v1102 = vpop.f32.mrb[0].mxu0
      %v1103 = vadd.f32 %v698, %v1102
      %v1104 = vpop.f32.mrb[0].mxu0
      %v1105 = vadd.f32 %v698, %v1104
      %v1106 = vpop.f32.mrb[0].mxu0
      %v1107 = vadd.f32 %v703, %v1106
      %v1108 = vpop.f32.mrb[0].mxu0
      %v1109 = vadd.f32 %v703, %v1108
      %1110 = vmatprep.mubr.bf16.mxu0 0
      %1111 = vmatmul.mubr.bf16.gmra.mrb[0].mxu0 %v900
      %v1112 = vpop.f32.mrb[0].mxu0
      %v1113 = vadd.f32 %v708, %v1112
      %v1114 = vpop.f32.mrb[0].mxu0
      %v1115 = vadd.f32 %v708, %v1114
      %v1116 = vpop.f32.mrb[0].mxu0
      %v1117 = vadd.f32 %v713, %v1116
      %v1118 = vpop.f32.mrb[0].mxu0
      %v1119 = vadd.f32 %v713, %v1118
      %1120 = vmatprep.mubr.bf16.mxu0 0
      %1121 = vmatmul.mubr.bf16.gmra.mrb[0].mxu0 %v903
      %v1122 = vpop.f32.mrb[0].mxu0
      %v1123 = vadd.f32 %v718, %v1122
      %v1124 = vpop.f32.mrb[0].mxu0
      %v1125 = vadd.f32 %v718, %v1124
      %v1126 = vpop.f32.mrb[0].mxu0
      %v1127 = vadd.f32 %v723, %v1126
      %v1128 = vpop.f32.mrb[0].mxu0
      %v1129 = vadd.f32 %v723, %v1128
      %1130 = vmatprep.mubr.bf16.mxu0 0
      %1131 = vmatmul.mubr.bf16.gmra.mrb[0].mxu0 %v906
      %v1132 = vpop.f32.mrb[0].mxu0
      %v1133 = vadd.f32 %v728, %v1132
      %v1134 = vpop.f32.mrb[0].mxu0
      %v1135 = vadd.f32 %v728, %v1134
      %v1136 = vpop.f32.mrb[0].mxu0
      %v1137 = vadd.f32 %v733, %v1136
      %v1138 = vpop.f32.mrb[0].mxu0
      %v1139 = vadd.f32 %v733, %v1138
      %1140 = vmatprep.mubr.bf16.mxu0 0
      %1141 = vmatmul.mubr.bf16.gmra.mrb[0].mxu0 %v909
      %v1142 = vpop.f32.mrb[0].mxu0
      %v1143 = vadd.f32 %v738, %v1142
      %v1144 = vpop.f32.mrb[0].mxu0
      %v1145 = vadd.f32 %v738, %v1144
      %v1146 = vpop.f32.mrb[0].mxu0
      %v1147 = vadd.f32 %v743, %v1146
      %v1148 = vpop.f32.mrb[0].mxu0
      %v1149 = vadd.f32 %v743, %v1148
      %1150 = vdwg.mxu0
      %v1151 = vmax.f32 %v953, 0.0
      %v1152 = vmax.f32 %v955, 0.0
      %v1153 = vmax.f32 %v957, 0.0
      %v1154 = vmax.f32 %v959, 0.0
      %v1155 = vmax.f32 %v963, 0.0
      %v1156 = vmax.f32 %v965, 0.0
      %v1157 = vmax.f32 %v967, 0.0
      %v1158 = vmax.f32 %v969, 0.0
      %v1159 = vmax.f32 %v973, 0.0
      %v1160 = vmax.f32 %v975, 0.0
      %v1161 = vmax.f32 %v977, 0.0
      %v1162 = vmax.f32 %v979, 0.0
      %v1163 = vmax.f32 %v983, 0.0
      %v1164 = vmax.f32 %v985, 0.0
      %v1165 = vmax.f32 %v987, 0.0
      %v1166 = vmax.f32 %v989, 0.0
      %v1167 = vmax.f32 %v993, 0.0
      %v1168 = vmax.f32 %v995, 0.0
      %v1169 = vmax.f32 %v997, 0.0
      %v1170 = vmax.f32 %v999, 0.0
      %v1171 = vmax.f32 %v1003, 0.0
      %v1172 = vmax.f32 %v1005, 0.0
      %v1173 = vmax.f32 %v1007, 0.0
      %v1174 = vmax.f32 %v1009, 0.0
      %v1175 = vmax.f32 %v1013, 0.0
      %v1176 = vmax.f32 %v1015, 0.0
      %v1177 = vmax.f32 %v1017, 0.0
      %v1178 = vmax.f32 %v1019, 0.0
      %v1179 = vmax.f32 %v1023, 0.0
      %v1180 = vmax.f32 %v1025, 0.0
      %v1181 = vmax.f32 %v1027, 0.0
      %v1182 = vmax.f32 %v1029, 0.0
      %v1183 = vmax.f32 %v1033, 0.0
      %v1184 = vmax.f32 %v1035, 0.0
      %v1185 = vmax.f32 %v1037, 0.0
      %v1186 = vmax.f32 %v1039, 0.0
      %v1187 = vmax.f32 %v1043, 0.0
      %v1188 = vmax.f32 %v1045, 0.0
      %v1189 = vmax.f32 %v1047, 0.0
      %v1190 = vmax.f32 %v1049, 0.0
      %v1191 = vmax.f32 %v1053, 0.0
      %v1192 = vmax.f32 %v1055, 0.0
      %v1193 = vmax.f32 %v1057, 0.0
      %v1194 = vmax.f32 %v1059, 0.0
      %v1195 = vmax.f32 %v1063, 0.0
      %v1196 = vmax.f32 %v1065, 0.0
      %v1197 = vmax.f32 %v1067, 0.0
      %v1198 = vmax.f32 %v1069, 0.0
      %v1199 = vmax.f32 %v1073, 0.0
      %v1200 = vmax.f32 %v1075, 0.0
      %v1201 = vmax.f32 %v1077, 0.0
      %v1202 = vmax.f32 %v1079, 0.0
      %v1203 = vmax.f32 %v1083, 0.0
      %v1204 = vmax.f32 %v1085, 0.0
      %v1205 = vmax.f32 %v1087, 0.0
      %v1206 = vmax.f32 %v1089, 0.0
      %v1207 = vmax.f32 %v1093, 0.0
      %v1208 = vmax.f32 %v1095, 0.0
      %v1209 = vmax.f32 %v1097, 0.0
      %v1210 = vmax.f32 %v1099, 0.0
      %v1211 = vmax.f32 %v1103, 0.0
      %v1212 = vmax.f32 %v1105, 0.0
      %v1213 = vmax.f32 %v1107, 0.0
      %v1214 = vmax.f32 %v1109, 0.0
      %v1215 = vmax.f32 %v1113, 0.0
      %v1216 = vmax.f32 %v1115, 0.0
      %v1217 = vmax.f32 %v1117, 0.0
      %v1218 = vmax.f32 %v1119, 0.0
      %v1219 = vmax.f32 %v1123, 0.0
      %v1220 = vmax.f32 %v1125, 0.0
      %v1221 = vmax.f32 %v1127, 0.0
      %v1222 = vmax.f32 %v1129, 0.0
      %v1223 = vmax.f32 %v1133, 0.0
      %v1224 = vmax.f32 %v1135, 0.0
      %v1225 = vmax.f32 %v1137, 0.0
      %v1226 = vmax.f32 %v1139, 0.0
      %v1227 = vmax.f32 %v1143, 0.0
      %v1228 = vmax.f32 %v1145, 0.0
      %v1229 = vmax.f32 %v1147, 0.0
      %v1230 = vmax.f32 %v1149, 0.0
      %v1231 = vpack.c.bf16 %v1153, %v1151
      %v1232 = vpack.c.bf16 %v1154, %v1152
      %v1233 = vpack.c.bf16 %v1157, %v1155
      %v1234 = vpack.c.bf16 %v1158, %v1156
      %v1235 = vpack.c.bf16 %v1161, %v1159
      %v1236 = vpack.c.bf16 %v1162, %v1160
      %v1237 = vpack.c.bf16 %v1165, %v1163
      %v1238 = vpack.c.bf16 %v1166, %v1164
      %v1239 = vpack.c.bf16 %v1169, %v1167
      %v1240 = vpack.c.bf16 %v1170, %v1168
      %v1241 = vpack.c.bf16 %v1173, %v1171
      %v1242 = vpack.c.bf16 %v1174, %v1172
      %v1243 = vpack.c.bf16 %v1177, %v1175
      %v1244 = vpack.c.bf16 %v1178, %v1176
      %v1245 = vpack.c.bf16 %v1181, %v1179
      %v1246 = vpack.c.bf16 %v1182, %v1180
      %v1247 = vpack.c.bf16 %v1185, %v1183
      %v1248 = vpack.c.bf16 %v1186, %v1184
      %v1249 = vpack.c.bf16 %v1189, %v1187
      %v1250 = vpack.c.bf16 %v1190, %v1188
      %v1251 = vpack.c.bf16 %v1193, %v1191
      %v1252 = vpack.c.bf16 %v1194, %v1192
      %v1253 = vpack.c.bf16 %v1197, %v1195
      %v1254 = vpack.c.bf16 %v1198, %v1196
      %v1255 = vpack.c.bf16 %v1201, %v1199
      %v1256 = vpack.c.bf16 %v1202, %v1200
      %v1257 = vpack.c.bf16 %v1205, %v1203
      %v1258 = vpack.c.bf16 %v1206, %v1204
      %v1259 = vpack.c.bf16 %v1209, %v1207
      %v1260 = vpack.c.bf16 %v1210, %v1208
      %v1261 = vpack.c.bf16 %v1213, %v1211
      %v1262 = vpack.c.bf16 %v1214, %v1212
      %v1263 = vpack.c.bf16 %v1217, %v1215
      %v1264 = vpack.c.bf16 %v1218, %v1216
      %v1265 = vpack.c.bf16 %v1221, %v1219
      %v1266 = vpack.c.bf16 %v1222, %v1220
      %v1267 = vpack.c.bf16 %v1225, %v1223
      %v1268 = vpack.c.bf16 %v1226, %v1224
      %v1269 = vpack.c.bf16 %v1229, %v1227
      %v1270 = vpack.c.bf16 %v1230, %v1228
      %v1271 = vld [vmem:[%s3] sm:$0xff]
      %v1272 = vld [vmem:[%s3 + $0x8] sm:$0xf]
      %v1273 = vld [vmem:[%s3 + $0xc] sm:$0x33]
      %v1274 = vld [vmem:[%s3 + $0x14] sm:$0x3]
      %v1275 = vld [vmem:[%s4] sm:$0xff]
      %v1276 = vld [vmem:[%s4 + $0x8] sm:$0x7]
      %1278 = vset.pattern.permute.xlu0 0
      %1279 = vperm.xlu0 %1278, %v1275
      %v1280 = vpop.permute.xlu0 %1279
      %1283 = vset.pattern.permute.xlu0 0
      %1284 = vperm.xlu0 %1283, %v1276
      %v1285 = vpop.permute.xlu0 %1284
      %v1291 = vunpack.c.l.b16 %v1271
      %v1292 = vunpack.c.h.b16 %v1271
      %v1293 = vunpack.c.l.b16 %v1272
      %v1294 = vunpack.c.l.b16 %v1273
      %v1295 = vunpack.c.h.b16 %v1273
      %v1296 = vunpack.c.l.b16 %v1274
      %v1297 = vpack.c.b16 %v1294, %v1291
      %v1298 = vpack.c.b16 %v1295, %v1292
      %v1299 = vpack.c.b16 %v1296, %v1293
      %vm1302 = vcmask 523264
      %v1304 = vsel %vm1302, %v1299, 0
      %1306 = vmatprep.subr.bf16.mxu0 %v1232
      %1307 = vmatpush1.bf16.msra.mxu0 %v1231
      %1308 = vmatprep.subr.bf16.mxu0 %v1234
      %1309 = vmatpush1.bf16.msra.mxu0 %v1233
      %1310 = vmatprep.subr.bf16.mxu0 %v1236
      %1311 = vmatpush1.bf16.msra.mxu0 %v1235
      %1312 = vmatprep.subr.bf16.mxu0 %v1238
      %1313 = vmatpush1.bf16.msra.mxu0 %v1237
      %1314 = vmatprep.subr.bf16.mxu0 %v1240
      %1315 = vmatpush1.bf16.msra.mxu0 %v1239
      %1316 = vmatprep.subr.bf16.mxu0 %v1242
      %1317 = vmatpush1.bf16.msra.mxu0 %v1241
      %1318 = vmatprep.subr.bf16.mxu0 %v1244
      %1319 = vmatpush1.bf16.msra.mxu0 %v1243
      %1320 = vmatprep.subr.bf16.mxu0 %v1246
      %1321 = vmatpush1.bf16.msra.mxu0 %v1245
      %1322 = vmatprep.subr.bf16.mxu0 %v1248
      %1323 = vmatpush1.bf16.msra.mxu0 %v1247
      %1324 = vmatprep.subr.bf16.mxu0 %v1250
      %1325 = vmatpush1.bf16.msra.mxu0 %v1249
      %1326 = vmatprep.subr.bf16.mxu0 %v1252
      %1327 = vmatpush1.bf16.msra.mxu0 %v1251
      %1328 = vmatprep.subr.bf16.mxu0 %v1254
      %1329 = vmatpush1.bf16.msra.mxu0 %v1253
      %1330 = vmatprep.subr.bf16.mxu0 %v1256
      %1331 = vmatpush1.bf16.msra.mxu0 %v1255
      %1332 = vmatprep.subr.bf16.mxu0 %v1258
      %1333 = vmatpush1.bf16.msra.mxu0 %v1257
      %1334 = vmatprep.subr.bf16.mxu0 %v1260
      %1335 = vmatpush1.bf16.msra.mxu0 %v1259
      %1336 = vmatprep.subr.bf16.mxu0 %v1262
      %1337 = vmatpush1.bf16.msra.mxu0 %v1261
      %1338 = vmatprep.mubr.bf16.mxu0 %v1298
      %1339 = vmatmul.mubr.bf16.gmra.mrb[0].mxu0 %v1297
      %v1340 = vpop.f32.mrb[0].mxu0
      %v1341 = vadd.f32 %v1280, %v1340
      %v1342 = vpop.f32.mrb[0].mxu0
      %v1343 = vadd.f32 %v1280, %v1342
      %v1344 = vpop.f32.mrb[0].mxu0
      %v1345 = vadd.f32 %v1285, %v1344
      %v1346 = vpop.f32.mrb[0].mxu0
      %v1347 = vadd.f32 %v1285, %v1346
      %1348 = vdwg.mxu0
      %1349 = vmatprep.subr.bf16.mxu0 %v1264
      %1350 = vmatpush1.bf16.msra.mxu0 %v1263
      %1351 = vmatprep.subr.bf16.mxu0 %v1266
      %1352 = vmatpush1.bf16.msra.mxu0 %v1265
      %1353 = vmatprep.subr.bf16.mxu0 %v1268
      %1354 = vmatpush1.bf16.msra.mxu0 %v1267
      %1355 = vmatprep.subr.bf16.mxu0 %v1270
      %1356 = vmatpush1.bf16.msra.mxu0 %v1269
      %1357 = vmatprep.subr.bf16.mxu0 0
      %1358 = vmatpush1.bf16.msra.mxu0 0
      %1359 = vmatprep.subr.bf16.mxu0 0
      %1360 = vmatpush1.bf16.msra.mxu0 0
      %1361 = vmatprep.subr.bf16.mxu0 0
      %1362 = vmatpush1.bf16.msra.mxu0 0
      %1363 = vmatprep.subr.bf16.mxu0 0
      %1364 = vmatpush1.bf16.msra.mxu0 0
      %1365 = vmatprep.subr.bf16.mxu0 0
      %1366 = vmatpush1.bf16.msra.mxu0 0
      %1367 = vmatprep.subr.bf16.mxu0 0
      %1368 = vmatpush1.bf16.msra.mxu0 0
      %1369 = vmatprep.subr.bf16.mxu0 0
      %1370 = vmatpush1.bf16.msra.mxu0 0
      %1371 = vmatprep.subr.bf16.mxu0 0
      %1372 = vmatpush1.bf16.msra.mxu0 0
      %1373 = vmatprep.subr.bf16.mxu0 0
      %1374 = vmatpush1.bf16.msra.mxu0 0
      %1375 = vmatprep.subr.bf16.mxu0 0
      %1376 = vmatpush1.bf16.msra.mxu0 0
      %1377 = vmatprep.subr.bf16.mxu0 0
      %1378 = vmatpush1.bf16.msra.mxu0 0
      %1379 = vmatprep.subr.bf16.mxu0 0
      %1380 = vmatpush1.bf16.msra.mxu0 0
      %1381 = vmatprep.mubr.bf16.mxu0 0
      %1382 = vmatmul.mubr.bf16.gmra.mrb[0].mxu0 %v1304
      %v1383 = vpop.f32.mrb[0].mxu0
      %v1384 = vadd.f32 %v1341, %v1383
      %v1385 = vpop.f32.mrb[0].mxu0
      %v1386 = vadd.f32 %v1343, %v1385
      %v1387 = vpop.f32.mrb[0].mxu0
      %v1388 = vadd.f32 %v1345, %v1387
      %v1389 = vpop.f32.mrb[0].mxu0
      %v1390 = vadd.f32 %v1347, %v1389
      %1391 = vdwg.mxu0
      %v1394 = vcombine.low %v1384, %v1386
      %1396 = vst [vmem:[%s422] sm:$0x77] %v1394
      %v1398 = vunpack.c.l.s4 1966171168
      %v1399 = vunpack.c.0.s8 %v1398
      %v1400 = vlaneseq
      %v1401 = vshrl.u32 %v1400, 7
      %v1402 = vsub.s32 %v1399, %v1401
      %v1403 = vrot.slane %v1394, %v1402
      %v1404 = vcombine.high %v1403, %v1403
      %v1406 = vunpack.c.l.s4 1966171168
      %v1407 = vunpack.c.0.s8 %v1406
      %v1408 = vlaneseq
      %v1409 = vshrl.u32 %v1408, 7
      %v1410 = vsub.s32 %v1407, %v1409
      %v1411 = vrot.slane %v1404, %v1410
      %v1412 = vcombine.high %v1411, %v1411
      %v1414 = vlaneseq
      %vm1415 = vcmp.ge.s32.totalorder %v1414, 0
      %vm1416 = vcmp.lt.s32.totalorder %v1414, 256
      %vm1417 = vmand %vm1415, %vm1416
      %1418 = vst.msk [vmem:[%s431] sm:$0x3] %vm1417, %v1412
      %v1419 = vcombine.high %v1384, %v1386
      %1421 = vst [vmem:[%s441] sm:$0x77] %v1419
      %v1425 = vunpack.c.l.s4 1983009808
      %v1426 = vunpack.c.0.s8 %v1425
      %v1427 = vlaneseq
      %v1428 = vshrl.u32 %v1427, 7
      %v1429 = vsub.s32 %v1426, %v1428
      %v1430 = vrot.slane %v1419, %v1429
      %v1431 = vcombine.high %v1430, %v1430
      %v1432 = vcombine.low %v1388, %v1390
      %v1434 = vunpack.c.l.s4 1983009808
      %v1435 = vunpack.c.0.s8 %v1434
      %v1436 = vlaneseq
      %v1437 = vshrl.u32 %v1436, 7
      %v1438 = vsub.s32 %v1435, %v1437
      %v1439 = vrot.slane %v1432, %v1438
      %vm1440 = vcmask 1040384
      %vm1441 = vcmask 1042434
      %vm1442 = vmor %vm1440, %vm1441
      %vm1443 = vcmask 1044484
      %vm1444 = vmor %vm1442, %vm1443
      %vm1445 = vcmask 1046534
      %vm1446 = vmor %vm1444, %vm1445
      %v1447 = vrot.slane %v1431, 7
      %v1448 = vrot.slane %v1447, 2
      %v1449 = vrot.slane %v1439, 7
      %v1450 = vsel %vm1446, %v1448, %v1449
      %1452 = vst [vmem:[%s451] sm:$0xf] %v1450
      %v1453 = vcombine.high %v1439, %v1439
      %v1454 = vrot.slane %v1449, 2
      %v1455 = vrot.slane %v1453, 7
      %v1456 = vsel %vm1446, %v1454, %v1455
      %1458 = vst [vmem:[%s461] sm:$0xf] %v1456
      %s1459 = smul.u32 2, %s26
      %p1460 = scmp.lt.s32.totalorder %s25, 1
      %s1461 = scalar_select %p1460, %s25, 1
      %p1462 = scmp.lt.s32.totalorder %s1459, 1
      %s1463 = scalar_select %p1462, %s1459, 1
      %s1464 = smul.addr %s1461, 2
      %s1465 = sadd.s32 %s1463, %s1464
      %s1466 = smul.addr %s1465, 4
      %s1467 = scalar_lea.vmem %s5, %s1466
      %s1468 = smul.u32 2, %s26
      %p1469 = scmp.lt.s32.totalorder %s25, 1
      %s1470 = scalar_select %p1469, %s25, 1
      %p1471 = scmp.lt.s32.totalorder %s1468, 1
      %s1472 = scalar_select %p1471, %s1468, 1
      %s1473 = smul.addr %s1470, 2
      %s1474 = sadd.s32 %s1472, %s1473
      %s1475 = scalar_lea.vmem %s6, %s1474
      %s1476 = smul.u32 2, %s26
      %p1477 = scmp.lt.s32.totalorder %s25, 1
      %s1478 = scalar_select %p1477, %s25, 1
      %p1479 = scmp.lt.s32.totalorder %s1476, 1
      %s1480 = scalar_select %p1479, %s1476, 1
      %s1481 = smul.addr %s1478, 2
      %s1482 = sadd.s32 %s1480, %s1481
      %s1483 = smul.addr %s1482, 4
      %s1484 = scalar_lea.vmem %s7, %s1483
      %s1485 = smul.u32 2, %s26
      %p1486 = scmp.lt.s32.totalorder %s25, 1
      %s1487 = scalar_select %p1486, %s25, 1
      %p1488 = scmp.lt.s32.totalorder %s1485, 1
      %s1489 = scalar_select %p1488, %s1485, 1
      %s1490 = smul.addr %s1487, 2
      %s1491 = sadd.s32 %s1489, %s1490
      %s1492 = smul.addr %s1491, 2
      %s1493 = scalar_lea.vmem %s8, %s1492
      %s1494 = smul.u32 2, %s26
      %p1495 = scmp.lt.s32.totalorder %s25, 1
      %s1496 = scalar_select %p1495, %s25, 1
      %p1497 = scmp.lt.s32.totalorder %s1494, 1
      %s1498 = scalar_select %p1497, %s1494, 1
      %s1499 = smul.addr %s1496, 2
      %s1500 = sadd.s32 %s1498, %s1499
      %s1501 = smul.addr %s1500, 2
      %s1502 = scalar_lea.vmem %s9, %s1501
      // Predicated region
      $region41: #{sep_head_forward.1} parent=39 // pred_check
        %p1503 = pneg %p165
      $region42: #{sep_head_forward.1} parent=39 // pred_check_branch
        %1505 = sbr.rel (%p1503) target = $region44
      $region43: #{sep_head_forward.1} parent=39 // pred_region
        %s1506 = smul.u32 2, %s26
      $region44: #{sep_head_forward.1} parent=39 // pred_fallthru
        _
      // Predicated region
      $region45: #{sep_head_forward.1} parent=39 // pred_check
        %p1507 = pneg %p193
      $region46: #{sep_head_forward.1} parent=39 // pred_check_branch
        %1509 = sbr.rel (%p1507) target = $region48
      $region47: #{sep_head_forward.1} parent=39 // pred_region
        %s1510 = smul.u32 2, %s26
      $region48: #{sep_head_forward.1} parent=39 // pred_fallthru
        _
      // Predicated region
      $region49: #{sep_head_forward.1} parent=39 // pred_check
        %p1511 = pneg %p221
      $region50: #{sep_head_forward.1} parent=39 // pred_check_branch
        %1513 = sbr.rel (%p1511) target = $region52
      $region51: #{sep_head_forward.1} parent=39 // pred_region
        %s1514 = smul.u32 2, %s26
      $region52: #{sep_head_forward.1} parent=39 // pred_fallthru
        _
      // Predicated region
      $region53: #{sep_head_forward.1} parent=39 // pred_check
        %p1515 = pneg %p249
      $region54: #{sep_head_forward.1} parent=39 // pred_check_branch
        %1517 = sbr.rel (%p1515) target = $region56
      $region55: #{sep_head_forward.1} parent=39 // pred_region
        %s1518 = smul.u32 2, %s26
      $region56: #{sep_head_forward.1} parent=39 // pred_fallthru
        _
      // Predicated region
      $region57: #{sep_head_forward.1} parent=39 // pred_check
        %p1519 = pneg %p277
      $region58: #{sep_head_forward.1} parent=39 // pred_check_branch
        %1521 = sbr.rel (%p1519) target = $region60
      $region59: #{sep_head_forward.1} parent=39 // pred_region
        %s1522 = smul.u32 2, %s26
      $region60: #{sep_head_forward.1} parent=39 // pred_fallthru
        _
    $region40: #{sep_head_forward.1} parent=5 // pred_fallthru
      _
    %p1523 = scmp.le.s32.totalorder 2, %s16
    // Predicated region
    $region61: #{sep_head_forward.1} parent=5 // pred_check
      %p1524 = pneg %p1523
    $region62: #{sep_head_forward.1} parent=5 // pred_check_branch
      %1526 = sbr.rel (%p1524) target = $region64
    $region63: #{sep_head_forward.1} parent=5 // pred_region
      %s1527 = ssub.s32 %s16, 2
      // Predicated region
      $region65: #{sep_head_forward.1} parent=63 // pred_check
        %p1528 = pneg %p171
      $region66: #{sep_head_forward.1} parent=63 // pred_check_branch
        %1530 = sbr.rel (%p1528) target = $region68
      $region67: #{sep_head_forward.1} parent=63 // pred_region
        %s1531 = smul.u32 2, %s28
        %p1532 = scmp.lt.s32.totalorder %s27, 1
        %s1533 = scalar_select %p1532, %s27, 1
        %p1534 = scmp.lt.s32.totalorder %s1531, 1
        %s1535 = scalar_select %p1534, %s1531, 1
        %s1536 = smul.addr %s1533, 2
        %s1537 = sadd.s32 %s1535, %s1536
        %s1538 = smul.addr %s1537, 4
        %s1539 = scalar_lea.vmem %s5, %s1538
      $region68: #{sep_head_forward.1} parent=63 // pred_fallthru
        _
      // Predicated region
      $region69: #{sep_head_forward.1} parent=63 // pred_check
        %p1540 = pneg %p199
      $region70: #{sep_head_forward.1} parent=63 // pred_check_branch
        %1542 = sbr.rel (%p1540) target = $region72
      $region71: #{sep_head_forward.1} parent=63 // pred_region
        %s1543 = smul.u32 2, %s28
        %p1544 = scmp.lt.s32.totalorder %s27, 1
        %s1545 = scalar_select %p1544, %s27, 1
        %p1546 = scmp.lt.s32.totalorder %s1543, 1
        %s1547 = scalar_select %p1546, %s1543, 1
        %s1548 = smul.addr %s1545, 2
        %s1549 = sadd.s32 %s1547, %s1548
        %s1550 = scalar_lea.vmem %s6, %s1549
      $region72: #{sep_head_forward.1} parent=63 // pred_fallthru
        _
      // Predicated region
      $region73: #{sep_head_forward.1} parent=63 // pred_check
        %p1551 = pneg %p227
      $region74: #{sep_head_forward.1} parent=63 // pred_check_branch
        %1553 = sbr.rel (%p1551) target = $region76
      $region75: #{sep_head_forward.1} parent=63 // pred_region
        %s1554 = smul.u32 2, %s28
        %p1555 = scmp.lt.s32.totalorder %s27, 1
        %s1556 = scalar_select %p1555, %s27, 1
        %p1557 = scmp.lt.s32.totalorder %s1554, 1
        %s1558 = scalar_select %p1557, %s1554, 1
        %s1559 = smul.addr %s1556, 2
        %s1560 = sadd.s32 %s1558, %s1559
        %s1561 = smul.addr %s1560, 4
        %s1562 = scalar_lea.vmem %s7, %s1561
      $region76: #{sep_head_forward.1} parent=63 // pred_fallthru
        _
      // Predicated region
      $region77: #{sep_head_forward.1} parent=63 // pred_check
        %p1563 = pneg %p255
      $region78: #{sep_head_forward.1} parent=63 // pred_check_branch
        %1565 = sbr.rel (%p1563) target = $region80
      $region79: #{sep_head_forward.1} parent=63 // pred_region
        %s1566 = smul.u32 2, %s28
        %p1567 = scmp.lt.s32.totalorder %s27, 1
        %s1568 = scalar_select %p1567, %s27, 1
        %p1569 = scmp.lt.s32.totalorder %s1566, 1
        %s1570 = scalar_select %p1569, %s1566, 1
        %s1571 = smul.addr %s1568, 2
        %s1572 = sadd.s32 %s1570, %s1571
        %s1573 = smul.addr %s1572, 2
        %s1574 = scalar_lea.vmem %s8, %s1573
      $region80: #{sep_head_forward.1} parent=63 // pred_fallthru
        _
      // Predicated region
      $region81: #{sep_head_forward.1} parent=63 // pred_check
        %p1575 = pneg %p283
      $region82: #{sep_head_forward.1} parent=63 // pred_check_branch
        %1577 = sbr.rel (%p1575) target = $region84
      $region83: #{sep_head_forward.1} parent=63 // pred_region
        %s1578 = smul.u32 2, %s28
        %p1579 = scmp.lt.s32.totalorder %s27, 1
        %s1580 = scalar_select %p1579, %s27, 1
        %p1581 = scmp.lt.s32.totalorder %s1578, 1
        %s1582 = scalar_select %p1581, %s1578, 1
        %s1583 = smul.addr %s1580, 2
        %s1584 = sadd.s32 %s1582, %s1583
        %s1585 = smul.addr %s1584, 2
        %s1586 = scalar_lea.vmem %s9, %s1585
      $region84: #{sep_head_forward.1} parent=63 // pred_fallthru
        _
    $region64: #{sep_head_forward.1} parent=5 // pred_fallthru
      _
  $region6: #{sep_head_forward.1} parent=0 // loop_footer
    %s20 = sadd.s32 1, %s16
  $region7: #{sep_head_forward.1} parent=0 // loop_footer_branch
    %15 = sbr.rel target = $region3
  $region8: #{sep_head_forward.1} parent=0 // loop_exit
    _

</llo_original>
